<compile_context>
chip_gen: v7x
topology: tpu7x:2x2x1
jax: 0.10.0
libtpu: 0.0.40
codegen_flags: <defaults>
</compile_context>

<pallas_src>
import jax
import jax.numpy as jnp
from jax.experimental import pallas as pl
from jax.experimental.pallas import tpu as pltpu


def _round_up(x, m):
    return (x + m - 1) // m * m


def _pick_tiles(N, tile_n, tile_k):
    """Minimal padding: N_pad = round_up(N, 128).  Tiles are multiples of 128 that
    divide N_pad (so tile_k never inflates the padded A).  Prefer >= 2 dst tiles
    so the 'parallel' axis can shard across both v7x TensorCores."""
    N_pad = _round_up(N, 128)

    def fit(t):
        t = max(128, min(_round_up(t, 128), N_pad))
        while N_pad % t:
            t -= 128
        return t

    tile_n = fit(tile_n)
    while tile_n > 128 and N_pad // tile_n < 2:
        tile_n = fit(tile_n - 128)
    tile_k = fit(tile_k)
    return tile_n, tile_k, N_pad


def _make_kernel(tile_k, resident_h):
    def kernel(a_ref, inv_ref, hk_ref, hself_ref, ws_ref, wn_ref, b_ref,
               out_ref, acc_ref):
        k = pl.program_id(1)

        @pl.when(k == 0)
        def _():
            acc_ref[...] = jnp.zeros_like(acc_ref)

        a = a_ref[...]
        if a_ref.dtype != jnp.bfloat16:
            # Quantized A storage (int8 on v5e/v6e, fp8 on v7x): widen after the
            # cheap VMEM load (VPU op); dequant scale is folded into inv_ref.
            # Values <= 127 are exact in bf16, so the MXU stays on the bf16 path.
            a = a.astype(jnp.float32).astype(jnp.bfloat16)

        if resident_h:
            # whole src-feature slab is resident in VMEM; slice the k-th chunk
            start = pl.multiple_of(k * tile_k, tile_k)
            hk = hk_ref[pl.ds(start, tile_k), :]
        else:
            hk = hk_ref[...]

        # weighted neighbor partial sum: (TN, TK) @ (TK, F) -> f32 acc (MXU)
        acc_ref[...] += jnp.dot(a, hk, preferred_element_type=jnp.float32)

        @pl.when(k == pl.num_programs(1) - 1)
        def _():
            # fn.mean semantics (+ any dequant scale), precomputed in the wrapper
            h_n = acc_ref[...] * inv_ref[...]                       # (TN, F) f32
            # fused concat([h, h_N]) @ W.T + b == h @ W_self + h_N @ W_neigh + b
            out = (jnp.dot(hself_ref[...].astype(jnp.float32), ws_ref[...],
                           preferred_element_type=jnp.float32)
                   + jnp.dot(h_n, wn_ref[...],
                             preferred_element_type=jnp.float32)
                   + b_ref[...])
            out_ref[...] = out.astype(out_ref.dtype)

    return kernel


def weighted_sage_conv(adj_w, deg, h, w_lin, b_lin, *, a_scale=1.0,
                       tile_n=512, tile_k=2048, resident_h=None):
    """DGL WeightedSAGEConv forward.

    adj_w  : (N, N) dense weighted adjacency, A[dst, src] (0 = no edge).  Pass it
             already in its storage dtype (bf16, or int8/fp8 with `a_scale`) to
             avoid any wrapper re-materialization of the dominant HBM stream.
    deg    : (N,) in-degree counts per dst node.
    h      : (N, F) node features.
    w_lin  : (O, 2F) nn.Linear(in_feats*2, out_feats) weight;  b_lin : (O,).
    a_scale: dequantization scale of adj_w (folded into the 1/deg factor).
    """
    N, F = h.shape
    O = w_lin.shape[0]
    tile_n, tile_k, N_pad = _pick_tiles(N, tile_n, tile_k)
    O_pad = _round_up(O, 128)                     # lane-dense (unmasked) stores

    # A stream: keep the caller's storage dtype; cast only if it arrives f32/f64,
    # pad only if N is not already 128-aligned.
    if adj_w.dtype in (jnp.float32, jnp.float64):
        adj_w = adj_w.astype(jnp.bfloat16)
    pad_n = N_pad - N
    if pad_n:
        adj_w = jnp.pad(adj_w, ((0, pad_n), (0, pad_n)))
        deg = jnp.pad(deg, ((0, pad_n),))
        h = jnp.pad(h, ((0, pad_n), (0, 0)))
    # single bf16 copy of h feeds BOTH the src stream and the self block
    h_bf = h if h.dtype == jnp.bfloat16 else h.astype(jnp.bfloat16)

    # mean normalization: 1/deg precomputed (exact f32, 0 for isolated / padded
    # nodes) with the A dequant scale folded in -> single broadcast mul in-kernel.
    deg_f = deg.astype(jnp.float32).reshape(N_pad, 1)
    inv_deg = jnp.where(deg_f > 0.0,
                        jnp.float32(a_scale) / jnp.maximum(deg_f, 1.0),
                        0.0)

    # split W into two sublane-clean operands (no in-kernel weight slicing)
    w_lin = jnp.asarray(w_lin, jnp.float32)
    w_self = jnp.zeros((F, O_pad), jnp.float32).at[:, :O].set(w_lin[:, :F].T)
    w_neigh = jnp.zeros((F, O_pad), jnp.float32).at[:, :O].set(w_lin[:, F:].T)
    bias = jnp.zeros((1, O_pad), jnp.float32).at[:, :O].set(
        jnp.asarray(b_lin, jnp.float32))

    if resident_h is None:                        # keep all src features in VMEM
        resident_h = N_pad * F * 2 <= (4 << 20)   # -> h streamed from HBM once

    grid = (N_pad // tile_n, N_pad // tile_k)

    hk_spec = (pl.BlockSpec((N_pad, F), lambda i, k: (0, 0)) if resident_h
               else pl.BlockSpec((tile_k, F), lambda i, k: (k, 0)))

    # explicit VMEM budget (v5e scoped default is only 16 MiB; v7x is per-TC)
    a_item = adj_w.dtype.itemsize
    hk_rows = N_pad if resident_h else tile_k
    vmem_bytes = (2 * tile_n * tile_k * a_item            # A double buffer
                  + 2 * hk_rows * max(F, 128) * 2         # src features
                  + 2 * tile_n * max(F, 128) * 2          # self features
                  + 2 * tile_n * 128 * 4                  # inv_deg (lane-padded)
                  + 2 * 2 * _round_up(F, 8) * O_pad * 4   # W_self + W_neigh
                  + 2 * 8 * O_pad * 4                     # bias
                  + 2 * tile_n * O_pad * 4                # output
                  + tile_n * max(F, 128) * 4)             # accumulator scratch
    vmem_limit = int(min(max(vmem_bytes * 3 // 2 + (2 << 20), 16 << 20), 64 << 20))

    flops = 2.0 * N_pad * N_pad * F + 2.0 * N_pad * (2 * F) * O_pad
    h_reads = 1 if resident_h else grid[0]
    bytes_accessed = (N_pad * N_pad * a_item               # A: dominant stream
                      + (h_reads + 1) * N_pad * F * 2      # src stream + self rows
                      + N_pad * (4 + O_pad * 4)            # inv_deg + output
                      + 2 * F * O_pad * 4 + O_pad * 4)     # weights + bias

    out = pl.pallas_call(
        _make_kernel(tile_k, resident_h),
        out_shape=jax.ShapeDtypeStruct((N_pad, O_pad), jnp.float32),
        grid_spec=pltpu.PrefetchScalarGridSpec(
            num_scalar_prefetch=0,
            grid=grid,
            in_specs=[
                pl.BlockSpec((tile_n, tile_k), lambda i, k: (i, k)),  # A[dst, src]
                pl.BlockSpec((tile_n, 1), lambda i, k: (i, 0)),       # scaled 1/deg
                hk_spec,                                              # h (src)
                pl.BlockSpec((tile_n, F), lambda i, k: (i, 0)),       # h (self)
                pl.BlockSpec((F, O_pad), lambda i, k: (0, 0)),        # W_self
                pl.BlockSpec((F, O_pad), lambda i, k: (0, 0)),        # W_neigh
                pl.BlockSpec((1, O_pad), lambda i, k: (0, 0)),        # bias
            ],
            out_specs=pl.BlockSpec((tile_n, O_pad), lambda i, k: (i, 0)),
            scratch_shapes=[pltpu.VMEM((tile_n, F), jnp.float32)],    # A@h acc
        ),
        compiler_params=pltpu.CompilerParams(
            dimension_semantics=("parallel", "arbitrary"),
            vmem_limit_bytes=vmem_limit),
        cost_estimate=pl.CostEstimate(
            flops=int(flops), transcendentals=0,
            bytes_accessed=int(bytes_accessed)),
    )(adj_w, inv_deg, h_bf, h_bf, w_self, w_neigh, bias)

    return out[:N, :O]


def reference(adj_w, deg, h, w_lin, b_lin):
    s = adj_w @ h
    deg = deg.reshape(-1, 1)
    h_n = jnp.where(deg > 0, s / jnp.maximum(deg, 1.0), 0.0)
    h_total = jnp.concatenate([h, h_n], axis=1)
    return h_total @ w_lin.T + b_lin


if __name__ == "__main__":
    key = jax.random.PRNGKey(0)
    N, F, O = 256, 64, 32          # nodes, in_feats, out_feats
    k_mask, k_w, k_h, k_lin, k_b = jax.random.split(key, 5)

    # Deterministic synthetic weighted graph (~5% density), dense A[dst, src].
    mask = (jax.random.uniform(k_mask, (N, N)) < 0.05).astype(jnp.float32)
    edge_w = jax.random.uniform(k_w, (N, N), dtype=jnp.float32)
    adj_w = mask * edge_w
    deg = mask.sum(axis=1)                     # in-degree counts per dst

    h = jax.random.normal(k_h, (N, F), dtype=jnp.float32)

    # nn.Linear(in_feats*2, out_feats): weight (O, 2F), bias (O,).
    bound = 1.0 / jnp.sqrt(2.0 * F)
    w_lin = jax.random.uniform(k_lin, (O, 2 * F), minval=-bound, maxval=bound,
                               dtype=jnp.float32)
    b_lin = jax.random.uniform(k_b, (O,), minval=-bound, maxval=bound,
                               dtype=jnp.float32)

    ref = reference(adj_w, deg, h, w_lin, b_lin)

    # --- default path: A stored upstream as bf16 (no wrapper pad/cast pre-pass:
    #     N is already 128-aligned), resident src features, fused epilogue.
    #     Small tiles so both grid axes have >= 2 steps at N=256.
    adj_bf16 = adj_w.astype(jnp.bfloat16)
    out = weighted_sage_conv(adj_bf16, deg, h, w_lin, b_lin,
                             tile_n=128, tile_k=128)
    out = jax.block_until_ready(out)
    assert out.shape == (N, O)
    assert jnp.allclose(out, ref, atol=2e-2, rtol=2e-2), \
        f"bf16 path max_err={float(jnp.max(jnp.abs(out - ref)))}"

    # --- quantized-A path (int8 storage as on v5e/v6e; fp8 e4m3 works the same
    #     way on v7x): dequant scale folded into 1/deg, streamed (non-resident) h.
    amax = float(jnp.max(jnp.abs(adj_w)))
    a_scale = amax / 127.0
    adj_i8 = jnp.round(adj_w / a_scale).astype(jnp.int8)
    out_q = weighted_sage_conv(adj_i8, deg, h, w_lin, b_lin, a_scale=a_scale,
                               tile_n=128, tile_k=256, resident_h=False)
    out_q = jax.block_until_ready(out_q)
    assert jnp.allclose(out_q, ref, atol=5e-2, rtol=5e-2), \
        f"int8 path max_err={float(jnp.max(jnp.abs(out_q - ref)))}"

    print("KERNEL_OK")
</pallas_src>

<mosaic_0001>
module attributes {stable_mosaic.version = 11 : i64} {
  func.func @kernel(%arg0: i32, %arg1: i32, %arg2: memref<128x128xbf16, #tpu.memory_space<vmem>>, %arg3: memref<128x1xf32, #tpu.memory_space<vmem>>, %arg4: memref<256x64xbf16, #tpu.memory_space<vmem>>, %arg5: memref<128x64xbf16, #tpu.memory_space<vmem>>, %arg6: memref<64x128xf32, #tpu.memory_space<vmem>>, %arg7: memref<64x128xf32, #tpu.memory_space<vmem>>, %arg8: memref<1x128xf32, #tpu.memory_space<vmem>>, %arg9: memref<128x128xf32, #tpu.memory_space<vmem>>, %arg10: memref<128x64xf32, #tpu.memory_space<vmem>>) attributes {dimension_semantics = [#tpu.dimension_semantics<parallel>, #tpu.dimension_semantics<arbitrary>], iteration_bounds = array<i64: 2, 2>, scalar_prefetch = 0 : i64, scratch_operands = 1 : i64, tpu.core_type = #tpu.core_type<tc>, window_params = [{transform_indices = @transform_0, window_bounds = array<i64: 128, 128>}, {transform_indices = @transform_1, window_bounds = array<i64: 128, 1>}, {pipeline_mode = #tpu.pipeline_mode<synchronous>, transform_indices = @transform_2, window_bounds = array<i64: 256, 64>}, {transform_indices = @transform_3, window_bounds = array<i64: 128, 64>}, {pipeline_mode = #tpu.pipeline_mode<synchronous>, transform_indices = @transform_4, window_bounds = array<i64: 64, 128>}, {pipeline_mode = #tpu.pipeline_mode<synchronous>, transform_indices = @transform_5, window_bounds = array<i64: 64, 128>}, {pipeline_mode = #tpu.pipeline_mode<synchronous>, transform_indices = @transform_6, window_bounds = array<i64: 1, 128>}, {transform_indices = @transform_7, window_bounds = array<i64: 128, 128>}]} {
    %c0_i32 = arith.constant 0 : i32
    %0 = arith.cmpi eq, %arg1, %c0_i32 : i32
    %1 = arith.extui %0 : i1 to i32
    %c0_i32_0 = arith.constant 0 : i32
    %2 = arith.cmpi ne, %1, %c0_i32_0 : i32
    scf.if %2 {
      %cst_8 = arith.constant 0.000000e+00 : f32
      %15 = vector.broadcast %cst_8 : f32 to vector<128x64xf32>
      %c0_9 = arith.constant 0 : index
      %c0_10 = arith.constant 0 : index
      %16 = vector.load %arg10[%c0_9, %c0_10] : memref<128x64xf32, #tpu.memory_space<vmem>>, vector<128x64xf32>
      tpu.vector_store %arg10[%c0_9, %c0_10], %15 {strides = array<i32>} : memref<128x64xf32, #tpu.memory_space<vmem>>, vector<128x64xf32>,
    } else {
    }
    %c0 = arith.constant 0 : index
    %c0_1 = arith.constant 0 : index
    %3 = vector.load %arg2[%c0, %c0_1] : memref<128x128xbf16, #tpu.memory_space<vmem>>, vector<128x128xbf16>
    %c128_i32 = arith.constant 128 : i32
    %4 = arith.muli %arg1, %c128_i32 : i32
    %5 = tpu.assume_multiple %4, 128 : i32
    %6 = arith.index_cast %5 : i32 to index
    %c0_2 = arith.constant 0 : index
    %7 = vector.load %arg4[%6, %c0_2] : memref<256x64xbf16, #tpu.memory_space<vmem>>, vector<128x64xbf16>
    %c0_3 = arith.constant 0 : index
    %c0_4 = arith.constant 0 : index
    %8 = vector.load %arg10[%c0_3, %c0_4] : memref<128x64xf32, #tpu.memory_space<vmem>>, vector<128x64xf32>
    %cst = arith.constant dense<0.000000e+00> : vector<128x64xf32>
    %9 = tpu.matmul %3, %7, %cst {dimension_numbers = #tpu.dot_dimension_numbers<[1], [0], [0], [1], [0, 0, 1, 1], [], []>} : vector<128x128xbf16>, vector<128x64xbf16>, vector<128x64xf32> -> vector<128x64xf32>
    %10 = arith.addf %8, %9 : vector<128x64xf32>
    %c0_5 = arith.constant 0 : index
    %c0_6 = arith.constant 0 : index
    %11 = vector.load %arg10[%c0_5, %c0_6] : memref<128x64xf32, #tpu.memory_space<vmem>>, vector<128x64xf32>
    tpu.vector_store %arg10[%c0_5, %c0_6], %10 {strides = array<i32>} : memref<128x64xf32, #tpu.memory_space<vmem>>, vector<128x64xf32>,
    %c1_i32 = arith.constant 1 : i32
    %12 = arith.cmpi eq, %arg1, %c1_i32 : i32
    %13 = arith.extui %12 : i1 to i32
    %c0_i32_7 = arith.constant 0 : i32
    %14 = arith.cmpi ne, %13, %c0_i32_7 : i32
    scf.if %14 {
      %c0_8 = arith.constant 0 : index
      %c0_9 = arith.constant 0 : index
      %15 = vector.load %arg10[%c0_8, %c0_9] : memref<128x64xf32, #tpu.memory_space<vmem>>, vector<128x64xf32>
      %c0_10 = arith.constant 0 : index
      %c0_11 = arith.constant 0 : index
      %16 = vector.load %arg3[%c0_10, %c0_11] : memref<128x1xf32, #tpu.memory_space<vmem>>, vector<128x1xf32>
      %17 = vector.broadcast %16 : vector<128x1xf32> to vector<128x64xf32>
      %18 = arith.mulf %15, %17 : vector<128x64xf32>
      %c0_12 = arith.constant 0 : index
      %c0_13 = arith.constant 0 : index
      %19 = vector.load %arg5[%c0_12, %c0_13] : memref<128x64xbf16, #tpu.memory_space<vmem>>, vector<128x64xbf16>
      %20 = arith.extf %19 : vector<128x64xbf16> to vector<128x64xf32>
      %c0_14 = arith.constant 0 : index
      %c0_15 = arith.constant 0 : index
      %21 = vector.load %arg6[%c0_14, %c0_15] : memref<64x128xf32, #tpu.memory_space<vmem>>, vector<64x128xf32>
      %cst_16 = arith.constant dense<0.000000e+00> : vector<128x128xf32>
      %22 = tpu.matmul %20, %21, %cst_16 {dimension_numbers = #tpu.dot_dimension_numbers<[1], [0], [0], [1], [0, 0, 1, 1], [], []>} : vector<128x64xf32>, vector<64x128xf32>, vector<128x128xf32> -> vector<128x128xf32>
      %c0_17 = arith.constant 0 : index
      %c0_18 = arith.constant 0 : index
      %23 = vector.load %arg7[%c0_17, %c0_18] : memref<64x128xf32, #tpu.memory_space<vmem>>, vector<64x128xf32>
      %cst_19 = arith.constant dense<0.000000e+00> : vector<128x128xf32>
      %24 = tpu.matmul %18, %23, %cst_19 {dimension_numbers = #tpu.dot_dimension_numbers<[1], [0], [0], [1], [0, 0, 1, 1], [], []>} : vector<128x64xf32>, vector<64x128xf32>, vector<128x128xf32> -> vector<128x128xf32>
      %25 = arith.addf %22, %24 : vector<128x128xf32>
      %c0_20 = arith.constant 0 : index
      %c0_21 = arith.constant 0 : index
      %26 = vector.load %arg8[%c0_20, %c0_21] : memref<1x128xf32, #tpu.memory_space<vmem>>, vector<1x128xf32>
      %27 = vector.broadcast %26 : vector<1x128xf32> to vector<128x128xf32>
      %28 = arith.addf %25, %27 : vector<128x128xf32>
      %c0_22 = arith.constant 0 : index
      %c0_23 = arith.constant 0 : index
      %29 = vector.load %arg9[%c0_22, %c0_23] : memref<128x128xf32, #tpu.memory_space<vmem>>, vector<128x128xf32>
      tpu.vector_store %arg9[%c0_22, %c0_23], %28 {strides = array<i32>} : memref<128x128xf32, #tpu.memory_space<vmem>>, vector<128x128xf32>,
    } else {
    }
    return
  }
  func.func @transform_0(%arg0: i32, %arg1: i32) -> (i32, i32) {
    %c0_i32 = arith.constant 0 : i32
    return %arg0, %arg1 : i32, i32
  }
  func.func @transform_1(%arg0: i32, %arg1: i32) -> (i32, i32) {
    %c0_i32 = arith.constant 0 : i32
    %c0_i32_0 = arith.constant 0 : i32
    return %arg0, %c0_i32 : i32, i32
  }
  func.func @transform_2(%arg0: i32, %arg1: i32) -> (i32, i32) {
    %c0_i32 = arith.constant 0 : i32
    %c0_i32_0 = arith.constant 0 : i32
    %c0_i32_1 = arith.constant 0 : i32
    return %c0_i32, %c0_i32_0 : i32, i32
  }
  func.func @transform_3(%arg0: i32, %arg1: i32) -> (i32, i32) {
    %c0_i32 = arith.constant 0 : i32
    %c0_i32_0 = arith.constant 0 : i32
    return %arg0, %c0_i32 : i32, i32
  }
  func.func @transform_4(%arg0: i32, %arg1: i32) -> (i32, i32) {
    %c0_i32 = arith.constant 0 : i32
    %c0_i32_0 = arith.constant 0 : i32
    %c0_i32_1 = arith.constant 0 : i32
    return %c0_i32, %c0_i32_0 : i32, i32
  }
  func.func @transform_5(%arg0: i32, %arg1: i32) -> (i32, i32) {
    %c0_i32 = arith.constant 0 : i32
    %c0_i32_0 = arith.constant 0 : i32
    %c0_i32_1 = arith.constant 0 : i32
    return %c0_i32, %c0_i32_0 : i32, i32
  }
  func.func @transform_6(%arg0: i32, %arg1: i32) -> (i32, i32) {
    %c0_i32 = arith.constant 0 : i32
    %c0_i32_0 = arith.constant 0 : i32
    %c0_i32_1 = arith.constant 0 : i32
    return %c0_i32, %c0_i32_0 : i32, i32
  }
  func.func @transform_7(%arg0: i32, %arg1: i32) -> (i32, i32) {
    %c0_i32 = arith.constant 0 : i32
    %c0_i32_0 = arith.constant 0 : i32
    return %arg0, %c0_i32 : i32, i32
  }
}

</mosaic_0001>

<llo_original>
// kernel: tpu_custom_call.1
$region0: #{tpu_custom_call.1}
  #allocation0 [shape = 'u32[]', space=smem, size = 0x4, offset = 0x4, fixed_abs, tag = 'smem constant byte address 0x4 - core index']
  #allocation1 [shape = 'u32[144,128]{1,0:T(1,128)}', space=vmem, size = 0x12000, scoped, tag = 'internal scratch']
  #allocation2 [shape = 'f32[128,64]{1,0:T(8,128)}', space=vmem, size = 0x10000, scoped, tag = 'scratch operand']
  %s0 = inlined_call_operand.vmem [shape: bf16[256,256], index: 0, kind: input, shape index: {}]
  %s1 = inlined_call_operand.vmem [shape: f32[256,1], index: 1, kind: input, shape index: {}]
  %s2 = inlined_call_operand.vmem [shape: bf16[256,64], index: 2, kind: input, shape index: {}]
  %s3 = inlined_call_operand.vmem [shape: bf16[256,64], index: 3, kind: input, shape index: {}]
  %s4 = inlined_call_operand.vmem [shape: f32[64,128], index: 4, kind: input, shape index: {}]
  %s5 = inlined_call_operand.vmem [shape: f32[64,128], index: 5, kind: input, shape index: {}]
  %s6 = inlined_call_operand.vmem [shape: f32[1,128], index: 6, kind: input, shape index: {}]
  %s7 = inlined_call_operand.hbm [shape: f32[256,128], index: 7, kind: output, shape index: {}]
  %s8 = sld [smem:[#allocation0]]
  $region110: #{tpu_custom_call.1} parent=0
    _
  %s10 = ssub.s32 1, %s8
  %s11 = scalar_select 0, %s10, %s8
  $region1: #{tpu_custom_call.1} parent=0
    #allocation3 [shape = 'u8[65536]{0}', space=vmem, size = 0x10000, scoped, tag = 'input window, operand 0']
    #allocation4 [shape = 'u8[131072]{0}', space=vmem, size = 0x20000, scoped, tag = 'output window, operand 0']
    #allocation5 [shape = 's32[2]{0}', space=sflag, size = 0x8, scoped, tag = 'scoped memory for tpu_custom_call.1']
    %12 = vsyncpa [#allocation5], 0
    %s13 = scalar_lea.sflag [#allocation5], 1
    %14 = vsyncpa %s13, 0
    loop: start=0, step=1, limit=6
    $region2: #{tpu_custom_call.1} parent=1 // loop_pre_header
      _
    $region3: #{tpu_custom_call.1} parent=1 // loop_header
      %s16 = sphi 0, %s20
      %p17 = scmp.ge.s32.totalorder %s16, 6
      %s23 = sphi 0, %s35
      %s24 = sphi 0, %s31
      %s25 = sphi 0, %s23
      %s26 = sphi 0, %s24
      %s27 = sphi 0, %s25
      %s28 = sphi 0, %s26
      %s40 = sphi 0, %s42
      %s43 = sphi 0, %s40
      %s44 = sphi 0, %s43
      %s60 = sphi 0, %s44
      %s66 = sphi 0, %s68
      %s69 = sphi 0, %s66
      %s70 = sphi 0, %s69
      %s86 = sphi 0, %s70
      %s90 = sphi 0, %s90
      %s92 = sphi 0, %s90
      %s93 = sphi 0, %s92
      %s107 = sphi 0, %s93
      %s113 = sphi 0, %s115
      %s116 = sphi 0, %s113
      %s117 = sphi 0, %s116
      %s133 = sphi 0, %s117
      %s137 = sphi 0, %s137
      %s139 = sphi 0, %s137
      %s140 = sphi 0, %s139
      %s154 = sphi 0, %s140
      %s158 = sphi 0, %s158
      %s160 = sphi 0, %s158
      %s161 = sphi 0, %s160
      %s175 = sphi 0, %s161
      %s179 = sphi 0, %s179
      %s181 = sphi 0, %s179
      %s182 = sphi 0, %s181
      %s196 = sphi 0, %s182
      %s202 = sphi 0, %s204
      %s205 = sphi 0, %s202
      %s206 = sphi 0, %s205
      %s222 = sphi 0, %s206
    $region4: #{tpu_custom_call.1} parent=1 // loop_header_branch
      %19 = sbr.rel (%p17) target = $region8
    $region5: #{tpu_custom_call.1} parent=1 // loop_body
      %s21 = ssub.s32 %s16, 1
      %s22 = ssub.s32 %s16, 2
      %s29 = sadd.s32 1, %s24
      %p30 = scmp.ge.s32.totalorder %s29, 2
      %s31 = scalar_select %p30, 0, %s29
      %s32 = sadd.s32 1, %s23
      %s33 = scalar_select %p30, %s32, %s23
      %p34 = scmp.ge.s32.totalorder %s33, 2
      %s35 = scalar_select %p34, 0, %s33
      %s36 = ssub.s32 %s23, %s35
      %s37 = ssub.s32 %s24, %s31
      %s38 = sor.u32 %s36, %s37
      %p39 = scmp.eq.s32.totalorder %s38, 0
      %s41 = sadd.s32 %s40, 1
      %s42 = scalar_select %p39, %s40, %s41
      %p45 = pneg %p39
      %p46 = scmp.eq.s32.totalorder %s16, 3
      %p47 = por %p45, %p46
      %p48 = scmp.ne.s32.totalorder %s40, %s43
      %p49 = scmp.eq.s32.totalorder %s16, 0
      %p50 = por %p48, %p49
      %p51 = scmp.ne.s32.totalorder %s40, %s43
      %p52 = scmp.eq.s32.totalorder %s21, 3
      %p53 = por %p51, %p52
      %p54 = scmp.ne.s32.totalorder %s43, %s44
      %p55 = scmp.eq.s32.totalorder %s21, 0
      %p56 = por %p54, %p55
      %p57 = scmp.ne.s32.totalorder %s43, %s44
      %p58 = scmp.eq.s32.totalorder %s22, 3
      %p59 = por %p57, %p58
      %p61 = scmp.ne.s32.totalorder %s44, %s60
      %p62 = scmp.eq.s32.totalorder %s22, 0
      %p63 = por %p61, %p62
      %s64 = ssub.s32 %s23, %s35
      %p65 = scmp.eq.s32.totalorder %s64, 0
      %s67 = sadd.s32 %s66, 1
      %s68 = scalar_select %p65, %s66, %s67
      %p71 = pneg %p65
      %p72 = scmp.eq.s32.totalorder %s16, 3
      %p73 = por %p71, %p72
      %p74 = scmp.ne.s32.totalorder %s66, %s69
      %p75 = scmp.eq.s32.totalorder %s16, 0
      %p76 = por %p74, %p75
      %p77 = scmp.ne.s32.totalorder %s66, %s69
      %p78 = scmp.eq.s32.totalorder %s21, 3
      %p79 = por %p77, %p78
      %p80 = scmp.ne.s32.totalorder %s69, %s70
      %p81 = scmp.eq.s32.totalorder %s21, 0
      %p82 = por %p80, %p81
      %p83 = scmp.ne.s32.totalorder %s69, %s70
      %p84 = scmp.eq.s32.totalorder %s22, 3
      %p85 = por %p83, %p84
      %p87 = scmp.ne.s32.totalorder %s70, %s86
      %p88 = scmp.eq.s32.totalorder %s22, 0
      %p89 = por %p87, %p88
      %s91 = sadd.s32 %s90, 1
      %p94 = scmp.eq.s32.totalorder %s16, 3
      %p95 = scmp.ne.s32.totalorder %s90, %s92
      %p96 = scmp.eq.s32.totalorder %s16, 0
      %p97 = por %p95, %p96
      %p98 = scmp.ne.s32.totalorder %s90, %s92
      %p99 = scmp.eq.s32.totalorder %s21, 3
      %p100 = por %p98, %p99
      %p101 = scmp.ne.s32.totalorder %s92, %s93
      %p102 = scmp.eq.s32.totalorder %s21, 0
      %p103 = por %p101, %p102
      %p104 = scmp.ne.s32.totalorder %s92, %s93
      %p105 = scmp.eq.s32.totalorder %s22, 3
      %p106 = por %p104, %p105
      %p108 = scmp.ne.s32.totalorder %s93, %s107
      %p109 = scmp.eq.s32.totalorder %s22, 0
      %p110 = por %p108, %p109
      %s111 = ssub.s32 %s23, %s35
      %p112 = scmp.eq.s32.totalorder %s111, 0
      %s114 = sadd.s32 %s113, 1
      %s115 = scalar_select %p112, %s113, %s114
      %p118 = pneg %p112
      %p119 = scmp.eq.s32.totalorder %s16, 3
      %p120 = por %p118, %p119
      %p121 = scmp.ne.s32.totalorder %s113, %s116
      %p122 = scmp.eq.s32.totalorder %s16, 0
      %p123 = por %p121, %p122
      %p124 = scmp.ne.s32.totalorder %s113, %s116
      %p125 = scmp.eq.s32.totalorder %s21, 3
      %p126 = por %p124, %p125
      %p127 = scmp.ne.s32.totalorder %s116, %s117
      %p128 = scmp.eq.s32.totalorder %s21, 0
      %p129 = por %p127, %p128
      %p130 = scmp.ne.s32.totalorder %s116, %s117
      %p131 = scmp.eq.s32.totalorder %s22, 3
      %p132 = por %p130, %p131
      %p134 = scmp.ne.s32.totalorder %s117, %s133
      %p135 = scmp.eq.s32.totalorder %s22, 0
      %p136 = por %p134, %p135
      %s138 = sadd.s32 %s137, 1
      %p141 = scmp.eq.s32.totalorder %s16, 3
      %p142 = scmp.ne.s32.totalorder %s137, %s139
      %p143 = scmp.eq.s32.totalorder %s16, 0
      %p144 = por %p142, %p143
      %p145 = scmp.ne.s32.totalorder %s137, %s139
      %p146 = scmp.eq.s32.totalorder %s21, 3
      %p147 = por %p145, %p146
      %p148 = scmp.ne.s32.totalorder %s139, %s140
      %p149 = scmp.eq.s32.totalorder %s21, 0
      %p150 = por %p148, %p149
      %p151 = scmp.ne.s32.totalorder %s139, %s140
      %p152 = scmp.eq.s32.totalorder %s22, 3
      %p153 = por %p151, %p152
      %p155 = scmp.ne.s32.totalorder %s140, %s154
      %p156 = scmp.eq.s32.totalorder %s22, 0
      %p157 = por %p155, %p156
      %s159 = sadd.s32 %s158, 1
      %p162 = scmp.eq.s32.totalorder %s16, 3
      %p163 = scmp.ne.s32.totalorder %s158, %s160
      %p164 = scmp.eq.s32.totalorder %s16, 0
      %p165 = por %p163, %p164
      %p166 = scmp.ne.s32.totalorder %s158, %s160
      %p167 = scmp.eq.s32.totalorder %s21, 3
      %p168 = por %p166, %p167
      %p169 = scmp.ne.s32.totalorder %s160, %s161
      %p170 = scmp.eq.s32.totalorder %s21, 0
      %p171 = por %p169, %p170
      %p172 = scmp.ne.s32.totalorder %s160, %s161
      %p173 = scmp.eq.s32.totalorder %s22, 3
      %p174 = por %p172, %p173
      %p176 = scmp.ne.s32.totalorder %s161, %s175
      %p177 = scmp.eq.s32.totalorder %s22, 0
      %p178 = por %p176, %p177
      %s180 = sadd.s32 %s179, 1
      %p183 = scmp.eq.s32.totalorder %s16, 3
      %p184 = scmp.ne.s32.totalorder %s179, %s181
      %p185 = scmp.eq.s32.totalorder %s16, 0
      %p186 = por %p184, %p185
      %p187 = scmp.ne.s32.totalorder %s179, %s181
      %p188 = scmp.eq.s32.totalorder %s21, 3
      %p189 = por %p187, %p188
      %p190 = scmp.ne.s32.totalorder %s181, %s182
      %p191 = scmp.eq.s32.totalorder %s21, 0
      %p192 = por %p190, %p191
      %p193 = scmp.ne.s32.totalorder %s181, %s182
      %p194 = scmp.eq.s32.totalorder %s22, 3
      %p195 = por %p193, %p194
      %p197 = scmp.ne.s32.totalorder %s182, %s196
      %p198 = scmp.eq.s32.totalorder %s22, 0
      %p199 = por %p197, %p198
      %s200 = ssub.s32 %s23, %s35
      %p201 = scmp.eq.s32.totalorder %s200, 0
      %s203 = sadd.s32 %s202, 1
      %s204 = scalar_select %p201, %s202, %s203
      %p207 = pneg %p201
      %p208 = scmp.eq.s32.totalorder %s16, 3
      %p209 = por %p207, %p208
      %p210 = scmp.ne.s32.totalorder %s202, %s205
      %p211 = scmp.eq.s32.totalorder %s16, 0
      %p212 = por %p210, %p211
      %p213 = scmp.ne.s32.totalorder %s202, %s205
      %p214 = scmp.eq.s32.totalorder %s21, 3
      %p215 = por %p213, %p214
      %p216 = scmp.ne.s32.totalorder %s205, %s206
      %p217 = scmp.eq.s32.totalorder %s21, 0
      %p218 = por %p216, %p217
      %p219 = scmp.ne.s32.totalorder %s205, %s206
      %p220 = scmp.eq.s32.totalorder %s22, 3
      %p221 = por %p219, %p220
      %p223 = scmp.ne.s32.totalorder %s206, %s222
      %p224 = scmp.eq.s32.totalorder %s22, 0
      %p225 = por %p223, %p224
      %p226 = scmp.le.s32.totalorder 1, %s16
      %p227 = scmp.lt.s32.totalorder %s16, 5
      %p228 = pnand %p226, %p227
      %p229 = pneg %p228
      // Predicated region
      $region9: #{tpu_custom_call.1} parent=5 // pred_check
        _
      $region10: #{tpu_custom_call.1} parent=5 // pred_check_branch
        %231 = sbr.rel (%p228) target = $region12
      $region11: #{tpu_custom_call.1} parent=5 // pred_region
        %s232 = ssub.s32 %s16, 1
        // Predicated region
        $region13: #{tpu_custom_call.1} parent=11 // pred_check
          %p233 = pneg %p103
        $region14: #{tpu_custom_call.1} parent=11 // pred_check_branch
          %235 = sbr.rel (%p233) target = $region16
        $region15: #{tpu_custom_call.1} parent=11 // pred_region
          _
        $region16: #{tpu_custom_call.1} parent=11 // pred_fallthru
          _
        // Predicated region
        $region17: #{tpu_custom_call.1} parent=11 // pred_check
          %p236 = pneg %p150
        $region18: #{tpu_custom_call.1} parent=11 // pred_check_branch
          %238 = sbr.rel (%p236) target = $region20
        $region19: #{tpu_custom_call.1} parent=11 // pred_region
          _
        $region20: #{tpu_custom_call.1} parent=11 // pred_fallthru
          _
        // Predicated region
        $region21: #{tpu_custom_call.1} parent=11 // pred_check
          %p239 = pneg %p171
        $region22: #{tpu_custom_call.1} parent=11 // pred_check_branch
          %241 = sbr.rel (%p239) target = $region24
        $region23: #{tpu_custom_call.1} parent=11 // pred_region
          _
        $region24: #{tpu_custom_call.1} parent=11 // pred_fallthru
          _
        // Predicated region
        $region25: #{tpu_custom_call.1} parent=11 // pred_check
          %p242 = pneg %p192
        $region26: #{tpu_custom_call.1} parent=11 // pred_check_branch
          %244 = sbr.rel (%p242) target = $region28
        $region27: #{tpu_custom_call.1} parent=11 // pred_region
          _
        $region28: #{tpu_custom_call.1} parent=11 // pred_fallthru
          _
      $region12: #{tpu_custom_call.1} parent=5 // pred_fallthru
        _
      %p245 = scmp.lt.s32.totalorder %s16, 4
      // Predicated region
      $region29: #{tpu_custom_call.1} parent=5 // pred_check
        %p246 = pneg %p245
      $region30: #{tpu_custom_call.1} parent=5 // pred_check_branch
        %248 = sbr.rel (%p246) target = $region32
      $region31: #{tpu_custom_call.1} parent=5 // pred_region
        // Predicated region
        $region33: #{tpu_custom_call.1} parent=31 // pred_check
          %p249 = pneg %p50
        $region34: #{tpu_custom_call.1} parent=31 // pred_check_branch
          %251 = sbr.rel (%p249) target = $region36
        $region35: #{tpu_custom_call.1} parent=31 // pred_region
          %s252 = sand.u32 %s40, 1
          %s253 = sand.u32 %s40, 1
          %s254 = smul.addr %s253, 64
          %s255 = scalar_lea.vmem [#allocation3], %s254
          %s256 = smul.u32 16, %s23
          %s257 = smul.addr %s256, 2
          %s258 = sadd.s32 %s24, %s257
          %s259 = smul.addr %s258, 4
          %s260 = scalar_lea.vmem %s0, %s259
          // Predicated region
          $region37: #{tpu_custom_call.1} parent=35 // pred_check
            _
          $region38: #{tpu_custom_call.1} parent=35 // pred_check_branch
            %262 = sbr.rel (0) target = $region40
          $region39: #{tpu_custom_call.1} parent=35 // pred_region
            // Predicated region
            $region41: #{tpu_custom_call.1} parent=39 // pred_check
              _
            $region42: #{tpu_custom_call.1} parent=39 // pred_check_branch
              %264 = sbr.rel target = $region44
            $region43: #{tpu_custom_call.1} parent=39 // pred_region
              // Predicated region
              $region56: #{tpu_custom_call.1} parent=43 // pred_check
                _
              $region57: #{tpu_custom_call.1} parent=43 // pred_check_branch
                %309 = sbr.rel (0) target = $region59
              $region58: #{tpu_custom_call.1} parent=43 // pred_region
                loop: start=0, step=1, limit=1
                $region60: #{tpu_custom_call.1} parent=58 // loop_pre_header
                  _
                $region61: #{tpu_custom_call.1} parent=58 // loop_header
                  %s311 = sphi 0, %s315
                  %p312 = scmp.ge.s32.totalorder %s311, 1
                  %s316 = sphi %s260, %s260
                  %s317 = sphi %s255, %s255
                $region62: #{tpu_custom_call.1} parent=58 // loop_header_branch
                  %314 = sbr.rel (%p312) target = $region66
                $region63: #{tpu_custom_call.1} parent=58 // loop_body
                  _
                $region64: #{tpu_custom_call.1} parent=58 // loop_footer
                  %s315 = sadd.s32 1, %s311
                $region65: #{tpu_custom_call.1} parent=58 // loop_footer_branch
                  %310 = sbr.rel target = $region61
                $region66: #{tpu_custom_call.1} parent=58 // loop_exit
                  _
                loop: start=0, step=1, limit=1
                $region67: #{tpu_custom_call.1} parent=58 // loop_pre_header
                  _
                $region68: #{tpu_custom_call.1} parent=58 // loop_header
                  %s320 = sphi 0, %s324
                  %p321 = scmp.ge.s32.totalorder %s320, 1
                  %s325 = sphi %s260, %s260
                  %s326 = sphi %s255, %s255
                $region69: #{tpu_custom_call.1} parent=58 // loop_header_branch
                  %323 = sbr.rel (%p321) target = $region73
                $region70: #{tpu_custom_call.1} parent=58 // loop_body
                  %v327 = vld [vmem:[%s325] sm:$0xf]
                  %328 = vst [vmem:[%s326] sm:$0xf] %v327
                  %v329 = vld [vmem:[%s325 + $0x8] sm:$0xf]
                  %330 = vst [vmem:[%s326 + $0x4] sm:$0xf] %v329
                  %v331 = vld [vmem:[%s325 + $0x10] sm:$0xf]
                  %332 = vst [vmem:[%s326 + $0x8] sm:$0xf] %v331
                  %v333 = vld [vmem:[%s325 + $0x18] sm:$0xf]
                  %334 = vst [vmem:[%s326 + $0xc] sm:$0xf] %v333
                  %v335 = vld [vmem:[%s325 + $0x20] sm:$0xf]
                  %336 = vst [vmem:[%s326 + $0x10] sm:$0xf] %v335
                  %v337 = vld [vmem:[%s325 + $0x28] sm:$0xf]
                  %338 = vst [vmem:[%s326 + $0x14] sm:$0xf] %v337
                  %v339 = vld [vmem:[%s325 + $0x30] sm:$0xf]
                  %340 = vst [vmem:[%s326 + $0x18] sm:$0xf] %v339
                  %v341 = vld [vmem:[%s325 + $0x38] sm:$0xf]
                  %342 = vst [vmem:[%s326 + $0x1c] sm:$0xf] %v341
                  %v343 = vld [vmem:[%s325 + $0x40] sm:$0xf]
                  %344 = vst [vmem:[%s326 + $0x20] sm:$0xf] %v343
                  %v345 = vld [vmem:[%s325 + $0x48] sm:$0xf]
                  %346 = vst [vmem:[%s326 + $0x24] sm:$0xf] %v345
                  %v347 = vld [vmem:[%s325 + $0x50] sm:$0xf]
                  %348 = vst [vmem:[%s326 + $0x28] sm:$0xf] %v347
                  %v349 = vld [vmem:[%s325 + $0x58] sm:$0xf]
                  %350 = vst [vmem:[%s326 + $0x2c] sm:$0xf] %v349
                  %v351 = vld [vmem:[%s325 + $0x60] sm:$0xf]
                  %352 = vst [vmem:[%s326 + $0x30] sm:$0xf] %v351
                  %v353 = vld [vmem:[%s325 + $0x68] sm:$0xf]
                  %354 = vst [vmem:[%s326 + $0x34] sm:$0xf] %v353
                  %v355 = vld [vmem:[%s325 + $0x70] sm:$0xf]
                  %356 = vst [vmem:[%s326 + $0x38] sm:$0xf] %v355
                  %v357 = vld [vmem:[%s325 + $0x78] sm:$0xf]
                  %358 = vst [vmem:[%s326 + $0x3c] sm:$0xf] %v357
                $region71: #{tpu_custom_call.1} parent=58 // loop_footer
                  %s324 = sadd.s32 1, %s320
                $region72: #{tpu_custom_call.1} parent=58 // loop_footer_branch
                  %319 = sbr.rel target = $region68
                $region73: #{tpu_custom_call.1} parent=58 // loop_exit
                  _
              $region59: #{tpu_custom_call.1} parent=43 // pred_fallthru
                _
            $region44: #{tpu_custom_call.1} parent=39 // pred_fallthru
              _
            // Predicated region
            $region45: #{tpu_custom_call.1} parent=39 // pred_check
              _
            $region46: #{tpu_custom_call.1} parent=39 // pred_check_branch
              %266 = sbr.rel (0) target = $region48
            $region47: #{tpu_custom_call.1} parent=39 // pred_region
              loop: start=0, step=1, limit=1
              $region49: #{tpu_custom_call.1} parent=47 // loop_pre_header
                _
              $region50: #{tpu_custom_call.1} parent=47 // loop_header
                %s269 = sphi 0, %s273
                %p270 = scmp.ge.s32.totalorder %s269, 1
                %s274 = sphi %s260, %s260
                %s275 = sphi %s255, %s255
              $region51: #{tpu_custom_call.1} parent=47 // loop_header_branch
                %272 = sbr.rel (%p270) target = $region55
              $region52: #{tpu_custom_call.1} parent=47 // loop_body
                %v276 = vld [vmem:[%s274] sm:$0xf]
                %277 = vst [vmem:[%s275] sm:$0xf] %v276
                %v278 = vld [vmem:[%s274 + $0x8] sm:$0xf]
                %279 = vst [vmem:[%s275 + $0x4] sm:$0xf] %v278
                %v280 = vld [vmem:[%s274 + $0x10] sm:$0xf]
                %281 = vst [vmem:[%s275 + $0x8] sm:$0xf] %v280
                %v282 = vld [vmem:[%s274 + $0x18] sm:$0xf]
                %283 = vst [vmem:[%s275 + $0xc] sm:$0xf] %v282
                %v284 = vld [vmem:[%s274 + $0x20] sm:$0xf]
                %285 = vst [vmem:[%s275 + $0x10] sm:$0xf] %v284
                %v286 = vld [vmem:[%s274 + $0x28] sm:$0xf]
                %287 = vst [vmem:[%s275 + $0x14] sm:$0xf] %v286
                %v288 = vld [vmem:[%s274 + $0x30] sm:$0xf]
                %289 = vst [vmem:[%s275 + $0x18] sm:$0xf] %v288
                %v290 = vld [vmem:[%s274 + $0x38] sm:$0xf]
                %291 = vst [vmem:[%s275 + $0x1c] sm:$0xf] %v290
                %v292 = vld [vmem:[%s274 + $0x40] sm:$0xf]
                %293 = vst [vmem:[%s275 + $0x20] sm:$0xf] %v292
                %v294 = vld [vmem:[%s274 + $0x48] sm:$0xf]
                %295 = vst [vmem:[%s275 + $0x24] sm:$0xf] %v294
                %v296 = vld [vmem:[%s274 + $0x50] sm:$0xf]
                %297 = vst [vmem:[%s275 + $0x28] sm:$0xf] %v296
                %v298 = vld [vmem:[%s274 + $0x58] sm:$0xf]
                %299 = vst [vmem:[%s275 + $0x2c] sm:$0xf] %v298
                %v300 = vld [vmem:[%s274 + $0x60] sm:$0xf]
                %301 = vst [vmem:[%s275 + $0x30] sm:$0xf] %v300
                %v302 = vld [vmem:[%s274 + $0x68] sm:$0xf]
                %303 = vst [vmem:[%s275 + $0x34] sm:$0xf] %v302
                %v304 = vld [vmem:[%s274 + $0x70] sm:$0xf]
                %305 = vst [vmem:[%s275 + $0x38] sm:$0xf] %v304
                %v306 = vld [vmem:[%s274 + $0x78] sm:$0xf]
                %307 = vst [vmem:[%s275 + $0x3c] sm:$0xf] %v306
              $region53: #{tpu_custom_call.1} parent=47 // loop_footer
                %s273 = sadd.s32 1, %s269
              $region54: #{tpu_custom_call.1} parent=47 // loop_footer_branch
                %268 = sbr.rel target = $region50
              $region55: #{tpu_custom_call.1} parent=47 // loop_exit
                _
            $region48: #{tpu_custom_call.1} parent=39 // pred_fallthru
              _
          $region40: #{tpu_custom_call.1} parent=35 // pred_fallthru
            _
          %359 = vnop
        $region36: #{tpu_custom_call.1} parent=31 // pred_fallthru
          _
        // Predicated region
        $region74: #{tpu_custom_call.1} parent=31 // pred_check
          %p360 = pneg %p76
        $region75: #{tpu_custom_call.1} parent=31 // pred_check_branch
          %362 = sbr.rel (%p360) target = $region77
        $region76: #{tpu_custom_call.1} parent=31 // pred_region
          %s363 = smul.u32 16, %s23
          %p364 = scmp.lt.s32.totalorder %s363, 31
          %s365 = scalar_select %p364, %s363, 31
          %s366 = smul.addr %s365, 8
          %s367 = scalar_lea.vmem %s1, %s366
          %s368 = smul.u32 16, %s23
        $region77: #{tpu_custom_call.1} parent=31 // pred_fallthru
          _
        // Predicated region
        $region78: #{tpu_custom_call.1} parent=31 // pred_check
          %p369 = pneg %p123
        $region79: #{tpu_custom_call.1} parent=31 // pred_check_branch
          %371 = sbr.rel (%p369) target = $region81
        $region80: #{tpu_custom_call.1} parent=31 // pred_region
          %s372 = smul.u32 16, %s23
          %p373 = scmp.lt.s32.totalorder %s372, 31
          %s374 = scalar_select %p373, %s372, 31
          %s375 = smul.addr %s374, 4
          %s376 = scalar_lea.vmem %s3, %s375
          %s377 = smul.u32 16, %s23
        $region81: #{tpu_custom_call.1} parent=31 // pred_fallthru
          _
      $region32: #{tpu_custom_call.1} parent=5 // pred_fallthru
        _
      %p378 = scmp.le.s32.totalorder 1, %s16
      %p379 = scmp.lt.s32.totalorder %s16, 5
      %p380 = pnand %p378, %p379
      %p381 = pneg %p380
      // Predicated region
      $region82: #{tpu_custom_call.1} parent=5 // pred_check
        _
      $region83: #{tpu_custom_call.1} parent=5 // pred_check_branch
        %383 = sbr.rel (%p380) target = $region85
      $region84: #{tpu_custom_call.1} parent=5 // pred_region
        %s384 = ssub.s32 %s16, 1
        %s385 = sand.u32 %s43, 1
        %s386 = sand.u32 %s43, 1
        %s387 = smul.addr %s386, 64
        %s388 = scalar_lea.vmem [#allocation3], %s387
        // Predicated region
        $region86: #{tpu_custom_call.1} parent=84 // pred_check
          %p389 = pneg %p56
        $region87: #{tpu_custom_call.1} parent=84 // pred_check_branch
          %391 = sbr.rel (%p389) target = $region89
        $region88: #{tpu_custom_call.1} parent=84 // pred_region
          _
        $region89: #{tpu_custom_call.1} parent=84 // pred_fallthru
          _
        %s392 = sand.u32 %s43, 1
        %s393 = sand.u32 %s43, 1
        %s394 = smul.addr %s393, 64
        %s395 = scalar_lea.vmem [#allocation3], %s394
        %p396 = pneg %p56
        %p397 = pneg %p53
        %s398 = smul.u32 16, %s25
        %p399 = scmp.lt.s32.totalorder %s398, 31
        %s400 = scalar_select %p399, %s398, 31
        %s401 = smul.addr %s400, 8
        %s402 = scalar_lea.vmem %s1, %s401
        %p403 = pneg %p82
        %p404 = pneg %p79
        %p405 = pneg %p103
        %p406 = pneg %p100
        %s407 = smul.u32 16, %s25
        %p408 = scmp.lt.s32.totalorder %s407, 31
        %s409 = scalar_select %p408, %s407, 31
        %s410 = smul.addr %s409, 4
        %s411 = scalar_lea.vmem %s3, %s410
        %p412 = pneg %p129
        %p413 = pneg %p126
        %p414 = pneg %p150
        %p415 = pneg %p147
        %p416 = pneg %p171
        %p417 = pneg %p168
        %p418 = pneg %p192
        %p419 = pneg %p189
        %p420 = pneg %p218
        %p421 = pneg %p215
        %s422 = sand.u32 %s205, 1
        %s423 = scalar_lea.sflag [#allocation5], %s422
        %s424 = sand.u32 %s205, 1
        %s425 = smul.addr %s424, 128
        %s426 = scalar_lea.vmem [#allocation4], %s425
        %s427 = smul.u32 16, %s25
        %s428 = smul.u32 16, %s25
        %p429 = scmp.lt.s32.totalorder %s428, 31
        %s430 = scalar_select %p429, %s428, 31
        %s431 = smul.addr %s430, 8
        %s432 = scalar_lea.vmem %s1, %s431
        %s433 = smul.u32 16, %s25
        %s434 = smul.u32 16, %s25
        %p435 = scmp.lt.s32.totalorder %s434, 31
        %s436 = scalar_select %p435, %s434, 31
        %s437 = smul.addr %s436, 4
        %s438 = scalar_lea.vmem %s3, %s437
        %s439 = smul.u32 16, %s25
        %s440 = smul.u32 16, %s25
        %p442 = scmp.eq.s32.totalorder %s26, 0
        // Predicated region
        $region90: #{tpu_custom_call.1} parent=84 // pred_check
          %p443 = pneg %p442
        $region91: #{tpu_custom_call.1} parent=84 // pred_check_branch
          %445 = sbr.rel (%p443) target = $region93
        $region92: #{tpu_custom_call.1} parent=84 // pred_region
          %vm446 = vcmask 523264
          %447 = vst.msk [vmem:[#allocation2] sm:$0xff] %vm446, 0.0
          %448 = vst.msk [vmem:[#allocation2 + $0x8] sm:$0xff] %vm446, 0.0
          %449 = vst.msk [vmem:[#allocation2 + $0x10] sm:$0xff] %vm446, 0.0
          %450 = vst.msk [vmem:[#allocation2 + $0x18] sm:$0xff] %vm446, 0.0
          %451 = vst.msk [vmem:[#allocation2 + $0x20] sm:$0xff] %vm446, 0.0
          %452 = vst.msk [vmem:[#allocation2 + $0x28] sm:$0xff] %vm446, 0.0
          %453 = vst.msk [vmem:[#allocation2 + $0x30] sm:$0xff] %vm446, 0.0
          %454 = vst.msk [vmem:[#allocation2 + $0x38] sm:$0xff] %vm446, 0.0
          %455 = vst.msk [vmem:[#allocation2 + $0x40] sm:$0xff] %vm446, 0.0
          %456 = vst.msk [vmem:[#allocation2 + $0x48] sm:$0xff] %vm446, 0.0
          %457 = vst.msk [vmem:[#allocation2 + $0x50] sm:$0xff] %vm446, 0.0
          %458 = vst.msk [vmem:[#allocation2 + $0x58] sm:$0xff] %vm446, 0.0
          %459 = vst.msk [vmem:[#allocation2 + $0x60] sm:$0xff] %vm446, 0.0
          %460 = vst.msk [vmem:[#allocation2 + $0x68] sm:$0xff] %vm446, 0.0
          %461 = vst.msk [vmem:[#allocation2 + $0x70] sm:$0xff] %vm446, 0.0
          %462 = vst.msk [vmem:[#allocation2 + $0x78] sm:$0xff] %vm446, 0.0
        $region93: #{tpu_custom_call.1} parent=84 // pred_fallthru
          _
        %v463 = vld [vmem:[%s388] sm:$0xf]
        %v464 = vld [vmem:[%s388 + $0x4] sm:$0xf]
        %v465 = vld [vmem:[%s388 + $0x8] sm:$0xf]
        %v466 = vld [vmem:[%s388 + $0xc] sm:$0xf]
        %v467 = vld [vmem:[%s388 + $0x10] sm:$0xf]
        %v468 = vld [vmem:[%s388 + $0x14] sm:$0xf]
        %v469 = vld [vmem:[%s388 + $0x18] sm:$0xf]
        %v470 = vld [vmem:[%s388 + $0x1c] sm:$0xf]
        %v471 = vld [vmem:[%s388 + $0x20] sm:$0xf]
        %v472 = vld [vmem:[%s388 + $0x24] sm:$0xf]
        %v473 = vld [vmem:[%s388 + $0x28] sm:$0xf]
        %v474 = vld [vmem:[%s388 + $0x2c] sm:$0xf]
        %v475 = vld [vmem:[%s388 + $0x30] sm:$0xf]
        %v476 = vld [vmem:[%s388 + $0x34] sm:$0xf]
        %v477 = vld [vmem:[%s388 + $0x38] sm:$0xf]
        %v478 = vld [vmem:[%s388 + $0x3c] sm:$0xf]
        %s479 = smul.u32 %s26, 128
        %s480 = sshra.s32 %s479, 3
        %s481 = sand.u32 %s479, 7
        %s482 = smul.addr %s480, 4
        %s483 = scalar_lea.vmem %s2, %s482
        %v484 = vld [vmem:[%s483] sm:$0xf]
        %v485 = vld [vmem:[%s483 + $0x4] sm:$0xf]
        %v486 = vld [vmem:[%s483 + $0x8] sm:$0xf]
        %v487 = vld [vmem:[%s483 + $0xc] sm:$0xf]
        %v488 = vld [vmem:[%s483 + $0x10] sm:$0xf]
        %v489 = vld [vmem:[%s483 + $0x14] sm:$0xf]
        %v490 = vld [vmem:[%s483 + $0x18] sm:$0xf]
        %v491 = vld [vmem:[%s483 + $0x1c] sm:$0xf]
        %v492 = vld [vmem:[%s483 + $0x20] sm:$0xf]
        %v493 = vld [vmem:[%s483 + $0x24] sm:$0xf]
        %v494 = vld [vmem:[%s483 + $0x28] sm:$0xf]
        %v495 = vld [vmem:[%s483 + $0x2c] sm:$0xf]
        %v496 = vld [vmem:[%s483 + $0x30] sm:$0xf]
        %v497 = vld [vmem:[%s483 + $0x34] sm:$0xf]
        %v498 = vld [vmem:[%s483 + $0x38] sm:$0xf]
        %v499 = vld [vmem:[%s483 + $0x3c] sm:$0xf]
        %v500 = vld [vmem:[#allocation2] sm:$0xff]
        %v501 = vld [vmem:[#allocation2 + $0x8] sm:$0xff]
        %v502 = vld [vmem:[#allocation2 + $0x10] sm:$0xff]
        %v503 = vld [vmem:[#allocation2 + $0x18] sm:$0xff]
        %v504 = vld [vmem:[#allocation2 + $0x20] sm:$0xff]
        %v505 = vld [vmem:[#allocation2 + $0x28] sm:$0xff]
        %v506 = vld [vmem:[#allocation2 + $0x30] sm:$0xff]
        %v507 = vld [vmem:[#allocation2 + $0x38] sm:$0xff]
        %v508 = vld [vmem:[#allocation2 + $0x40] sm:$0xff]
        %v509 = vld [vmem:[#allocation2 + $0x48] sm:$0xff]
        %v510 = vld [vmem:[#allocation2 + $0x50] sm:$0xff]
        %v511 = vld [vmem:[#allocation2 + $0x58] sm:$0xff]
        %v512 = vld [vmem:[#allocation2 + $0x60] sm:$0xff]
        %v513 = vld [vmem:[#allocation2 + $0x68] sm:$0xff]
        %v514 = vld [vmem:[#allocation2 + $0x70] sm:$0xff]
        %v515 = vld [vmem:[#allocation2 + $0x78] sm:$0xff]
        %v532 = vunpack.c.l.b16 %v463
        %v533 = vunpack.c.l.b16 %v464
        %v534 = vunpack.c.l.b16 %v465
        %v535 = vunpack.c.l.b16 %v466
        %v536 = vunpack.c.l.b16 %v467
        %v537 = vunpack.c.l.b16 %v468
        %v538 = vunpack.c.l.b16 %v469
        %v539 = vunpack.c.l.b16 %v470
        %v540 = vunpack.c.l.b16 %v471
        %v541 = vunpack.c.l.b16 %v472
        %v542 = vunpack.c.l.b16 %v473
        %v543 = vunpack.c.l.b16 %v474
        %v544 = vunpack.c.l.b16 %v475
        %v545 = vunpack.c.l.b16 %v476
        %v546 = vunpack.c.l.b16 %v477
        %v547 = vunpack.c.l.b16 %v478
        %v548 = vpack.c.b16 %v533, %v532
        %v549 = vpack.c.b16 %v535, %v534
        %v550 = vpack.c.b16 %v537, %v536
        %v551 = vpack.c.b16 %v539, %v538
        %v552 = vpack.c.b16 %v541, %v540
        %v553 = vpack.c.b16 %v543, %v542
        %v554 = vpack.c.b16 %v545, %v544
        %v555 = vpack.c.b16 %v547, %v546
        %v580 = vunpack.c.l.b16 %v484
        %v581 = vunpack.c.l.b16 %v485
        %v582 = vunpack.c.l.b16 %v486
        %v583 = vunpack.c.l.b16 %v487
        %v584 = vunpack.c.l.b16 %v488
        %v585 = vunpack.c.l.b16 %v489
        %v586 = vunpack.c.l.b16 %v490
        %v587 = vunpack.c.l.b16 %v491
        %v588 = vunpack.c.l.b16 %v492
        %v589 = vunpack.c.l.b16 %v493
        %v590 = vunpack.c.l.b16 %v494
        %v591 = vunpack.c.l.b16 %v495
        %v592 = vunpack.c.l.b16 %v496
        %v593 = vunpack.c.l.b16 %v497
        %v594 = vunpack.c.l.b16 %v498
        %v595 = vunpack.c.l.b16 %v499
        %v596 = vpack.c.b16 %v581, %v580
        %v597 = vpack.c.b16 %v583, %v582
        %v598 = vpack.c.b16 %v585, %v584
        %v599 = vpack.c.b16 %v587, %v586
        %v600 = vpack.c.b16 %v589, %v588
        %v601 = vpack.c.b16 %v591, %v590
        %v602 = vpack.c.b16 %v593, %v592
        %v603 = vpack.c.b16 %v595, %v594
        %612 = vmatprep.subr.bf16.mxu0 0
        %613 = vmatpush1.bf16.msra.mxu0 %v596
        %614 = vmatprep.subr.bf16.mxu0 0
        %615 = vmatpush1.bf16.msra.mxu0 %v597
        %616 = vmatprep.subr.bf16.mxu0 0
        %617 = vmatpush1.bf16.msra.mxu0 %v598
        %618 = vmatprep.subr.bf16.mxu0 0
        %619 = vmatpush1.bf16.msra.mxu0 %v599
        %620 = vmatprep.subr.bf16.mxu0 0
        %621 = vmatpush1.bf16.msra.mxu0 %v600
        %622 = vmatprep.subr.bf16.mxu0 0
        %623 = vmatpush1.bf16.msra.mxu0 %v601
        %624 = vmatprep.subr.bf16.mxu0 0
        %625 = vmatpush1.bf16.msra.mxu0 %v602
        %626 = vmatprep.subr.bf16.mxu0 0
        %627 = vmatpush1.bf16.msra.mxu0 %v603
        %628 = vmatprep.subr.bf16.mxu0 0
        %629 = vmatpush1.bf16.msra.mxu0 0
        %630 = vmatprep.subr.bf16.mxu0 0
        %631 = vmatpush1.bf16.msra.mxu0 0
        %632 = vmatprep.subr.bf16.mxu0 0
        %633 = vmatpush1.bf16.msra.mxu0 0
        %634 = vmatprep.subr.bf16.mxu0 0
        %635 = vmatpush1.bf16.msra.mxu0 0
        %636 = vmatprep.subr.bf16.mxu0 0
        %637 = vmatpush1.bf16.msra.mxu0 0
        %638 = vmatprep.subr.bf16.mxu0 0
        %639 = vmatpush1.bf16.msra.mxu0 0
        %640 = vmatprep.subr.bf16.mxu0 0
        %641 = vmatpush1.bf16.msra.mxu0 0
        %642 = vmatprep.subr.bf16.mxu0 0
        %643 = vmatpush1.bf16.msra.mxu0 0
        %644 = vmatprep.mubr.bf16.mxu0 0
        %645 = vmatmul.mubr.bf16.gmra.mrb[0].mxu0 %v548
        %v646 = vpop.f32.mrb[0].mxu0
        %v647 = vadd.f32 0.0, %v646
        %v648 = vpop.f32.mrb[0].mxu0
        %v649 = vpop.f32.mrb[0].mxu0
        %v650 = vadd.f32 0.0, %v649
        %v651 = vpop.f32.mrb[0].mxu0
        %652 = vmatprep.mubr.bf16.mxu0 0
        %653 = vmatmul.mubr.bf16.gmra.mrb[0].mxu0 %v549
        %v654 = vpop.f32.mrb[0].mxu0
        %v655 = vadd.f32 0.0, %v654
        %v656 = vpop.f32.mrb[0].mxu0
        %v657 = vpop.f32.mrb[0].mxu0
        %v658 = vadd.f32 0.0, %v657
        %v659 = vpop.f32.mrb[0].mxu0
        %660 = vmatprep.mubr.bf16.mxu0 0
        %661 = vmatmul.mubr.bf16.gmra.mrb[0].mxu0 %v550
        %v662 = vpop.f32.mrb[0].mxu0
        %v663 = vadd.f32 0.0, %v662
        %v664 = vpop.f32.mrb[0].mxu0
        %v665 = vpop.f32.mrb[0].mxu0
        %v666 = vadd.f32 0.0, %v665
        %v667 = vpop.f32.mrb[0].mxu0
        %668 = vmatprep.mubr.bf16.mxu0 0
        %669 = vmatmul.mubr.bf16.gmra.mrb[0].mxu0 %v551
        %v670 = vpop.f32.mrb[0].mxu0
        %v671 = vadd.f32 0.0, %v670
        %v672 = vpop.f32.mrb[0].mxu0
        %v673 = vpop.f32.mrb[0].mxu0
        %v674 = vadd.f32 0.0, %v673
        %v675 = vpop.f32.mrb[0].mxu0
        %676 = vmatprep.mubr.bf16.mxu0 0
        %677 = vmatmul.mubr.bf16.gmra.mrb[0].mxu0 %v552
        %v678 = vpop.f32.mrb[0].mxu0
        %v679 = vadd.f32 0.0, %v678
        %v680 = vpop.f32.mrb[0].mxu0
        %v681 = vpop.f32.mrb[0].mxu0
        %v682 = vadd.f32 0.0, %v681
        %v683 = vpop.f32.mrb[0].mxu0
        %684 = vmatprep.mubr.bf16.mxu0 0
        %685 = vmatmul.mubr.bf16.gmra.mrb[0].mxu0 %v553
        %v686 = vpop.f32.mrb[0].mxu0
        %v687 = vadd.f32 0.0, %v686
        %v688 = vpop.f32.mrb[0].mxu0
        %v689 = vpop.f32.mrb[0].mxu0
        %v690 = vadd.f32 0.0, %v689
        %v691 = vpop.f32.mrb[0].mxu0
        %692 = vmatprep.mubr.bf16.mxu0 0
        %693 = vmatmul.mubr.bf16.gmra.mrb[0].mxu0 %v554
        %v694 = vpop.f32.mrb[0].mxu0
        %v695 = vadd.f32 0.0, %v694
        %v696 = vpop.f32.mrb[0].mxu0
        %v697 = vpop.f32.mrb[0].mxu0
        %v698 = vadd.f32 0.0, %v697
        %v699 = vpop.f32.mrb[0].mxu0
        %700 = vmatprep.mubr.bf16.mxu0 0
        %701 = vmatmul.mubr.bf16.gmra.mrb[0].mxu0 %v555
        %v702 = vpop.f32.mrb[0].mxu0
        %v703 = vadd.f32 0.0, %v702
        %v704 = vpop.f32.mrb[0].mxu0
        %v705 = vpop.f32.mrb[0].mxu0
        %v706 = vadd.f32 0.0, %v705
        %v707 = vpop.f32.mrb[0].mxu0
        %708 = vdwg.mxu0
        %v709 = vadd.f32 %v500, %v647
        %v710 = vadd.f32 %v501, %v650
        %v711 = vadd.f32 %v502, %v655
        %v712 = vadd.f32 %v503, %v658
        %v713 = vadd.f32 %v504, %v663
        %v714 = vadd.f32 %v505, %v666
        %v715 = vadd.f32 %v506, %v671
        %v716 = vadd.f32 %v507, %v674
        %v717 = vadd.f32 %v508, %v679
        %v718 = vadd.f32 %v509, %v682
        %v719 = vadd.f32 %v510, %v687
        %v720 = vadd.f32 %v511, %v690
        %v721 = vadd.f32 %v512, %v695
        %v722 = vadd.f32 %v513, %v698
        %v723 = vadd.f32 %v514, %v703
        %v724 = vadd.f32 %v515, %v706
        %vm725 = vcmask 523264
        %726 = vst.msk [vmem:[#allocation2] sm:$0xff] %vm725, %v709
        %727 = vst.msk [vmem:[#allocation2 + $0x8] sm:$0xff] %vm725, %v710
        %728 = vst.msk [vmem:[#allocation2 + $0x10] sm:$0xff] %vm725, %v711
        %729 = vst.msk [vmem:[#allocation2 + $0x18] sm:$0xff] %vm725, %v712
        %730 = vst.msk [vmem:[#allocation2 + $0x20] sm:$0xff] %vm725, %v713
        %731 = vst.msk [vmem:[#allocation2 + $0x28] sm:$0xff] %vm725, %v714
        %732 = vst.msk [vmem:[#allocation2 + $0x30] sm:$0xff] %vm725, %v715
        %733 = vst.msk [vmem:[#allocation2 + $0x38] sm:$0xff] %vm725, %v716
        %734 = vst.msk [vmem:[#allocation2 + $0x40] sm:$0xff] %vm725, %v717
        %735 = vst.msk [vmem:[#allocation2 + $0x48] sm:$0xff] %vm725, %v718
        %736 = vst.msk [vmem:[#allocation2 + $0x50] sm:$0xff] %vm725, %v719
        %737 = vst.msk [vmem:[#allocation2 + $0x58] sm:$0xff] %vm725, %v720
        %738 = vst.msk [vmem:[#allocation2 + $0x60] sm:$0xff] %vm725, %v721
        %739 = vst.msk [vmem:[#allocation2 + $0x68] sm:$0xff] %vm725, %v722
        %740 = vst.msk [vmem:[#allocation2 + $0x70] sm:$0xff] %vm725, %v723
        %741 = vst.msk [vmem:[#allocation2 + $0x78] sm:$0xff] %vm725, %v724
        %p742 = scmp.eq.s32.totalorder %s26, 1
        // Predicated region
        $region94: #{tpu_custom_call.1} parent=84 // pred_check
          %p743 = pneg %p742
        $region95: #{tpu_custom_call.1} parent=84 // pred_check_branch
          %745 = sbr.rel (%p743) target = $region97
        $region96: #{tpu_custom_call.1} parent=84 // pred_region
          %v746 = vld [vmem:[#allocation2] sm:$0xff]
          %v747 = vld [vmem:[#allocation2 + $0x8] sm:$0xff]
          %v748 = vld [vmem:[#allocation2 + $0x10] sm:$0xff]
          %v749 = vld [vmem:[#allocation2 + $0x18] sm:$0xff]
          %v750 = vld [vmem:[#allocation2 + $0x20] sm:$0xff]
          %v751 = vld [vmem:[#allocation2 + $0x28] sm:$0xff]
          %v752 = vld [vmem:[#allocation2 + $0x30] sm:$0xff]
          %v753 = vld [vmem:[#allocation2 + $0x38] sm:$0xff]
          %v754 = vld [vmem:[#allocation2 + $0x40] sm:$0xff]
          %v755 = vld [vmem:[#allocation2 + $0x48] sm:$0xff]
          %v756 = vld [vmem:[#allocation2 + $0x50] sm:$0xff]
          %v757 = vld [vmem:[#allocation2 + $0x58] sm:$0xff]
          %v758 = vld [vmem:[#allocation2 + $0x60] sm:$0xff]
          %v759 = vld [vmem:[#allocation2 + $0x68] sm:$0xff]
          %v760 = vld [vmem:[#allocation2 + $0x70] sm:$0xff]
          %v761 = vld [vmem:[#allocation2 + $0x78] sm:$0xff]
          %v762 = vld [vmem:[%s432] sm:$0xff]
          %v763 = vld [vmem:[%s432 + $0x8] sm:$0xff]
          %v764 = vld [vmem:[%s432 + $0x10] sm:$0xff]
          %v765 = vld [vmem:[%s432 + $0x18] sm:$0xff]
          %v766 = vld [vmem:[%s432 + $0x20] sm:$0xff]
          %v767 = vld [vmem:[%s432 + $0x28] sm:$0xff]
          %v768 = vld [vmem:[%s432 + $0x30] sm:$0xff]
          %v769 = vld [vmem:[%s432 + $0x38] sm:$0xff]
          %v770 = vld [vmem:[%s432 + $0x40] sm:$0xff]
          %v771 = vld [vmem:[%s432 + $0x48] sm:$0xff]
          %v772 = vld [vmem:[%s432 + $0x50] sm:$0xff]
          %v773 = vld [vmem:[%s432 + $0x58] sm:$0xff]
          %v774 = vld [vmem:[%s432 + $0x60] sm:$0xff]
          %v775 = vld [vmem:[%s432 + $0x68] sm:$0xff]
          %v776 = vld [vmem:[%s432 + $0x70] sm:$0xff]
          %v777 = vld [vmem:[%s432 + $0x78] sm:$0xff]
          %779 = vset.pattern.permute.xlu0 0
          %780 = vperm.xlu0 %779, %v762
          %v781 = vpop.permute.xlu0 %780
          %784 = vset.pattern.permute.xlu0 0
          %785 = vperm.xlu0 %784, %v763
          %v786 = vpop.permute.xlu0 %785
          %789 = vset.pattern.permute.xlu0 0
          %790 = vperm.xlu0 %789, %v764
          %v791 = vpop.permute.xlu0 %790
          %794 = vset.pattern.permute.xlu0 0
          %795 = vperm.xlu0 %794, %v765
          %v796 = vpop.permute.xlu0 %795
          %799 = vset.pattern.permute.xlu0 0
          %800 = vperm.xlu0 %799, %v766
          %v801 = vpop.permute.xlu0 %800
          %804 = vset.pattern.permute.xlu0 0
          %805 = vperm.xlu0 %804, %v767
          %v806 = vpop.permute.xlu0 %805
          %809 = vset.pattern.permute.xlu0 0
          %810 = vperm.xlu0 %809, %v768
          %v811 = vpop.permute.xlu0 %810
          %814 = vset.pattern.permute.xlu0 0
          %815 = vperm.xlu0 %814, %v769
          %v816 = vpop.permute.xlu0 %815
          %819 = vset.pattern.permute.xlu0 0
          %820 = vperm.xlu0 %819, %v770
          %v821 = vpop.permute.xlu0 %820
          %824 = vset.pattern.permute.xlu0 0
          %825 = vperm.xlu0 %824, %v771
          %v826 = vpop.permute.xlu0 %825
          %829 = vset.pattern.permute.xlu0 0
          %830 = vperm.xlu0 %829, %v772
          %v831 = vpop.permute.xlu0 %830
          %834 = vset.pattern.permute.xlu0 0
          %835 = vperm.xlu0 %834, %v773
          %v836 = vpop.permute.xlu0 %835
          %839 = vset.pattern.permute.xlu0 0
          %840 = vperm.xlu0 %839, %v774
          %v841 = vpop.permute.xlu0 %840
          %844 = vset.pattern.permute.xlu0 0
          %845 = vperm.xlu0 %844, %v775
          %v846 = vpop.permute.xlu0 %845
          %849 = vset.pattern.permute.xlu0 0
          %850 = vperm.xlu0 %849, %v776
          %v851 = vpop.permute.xlu0 %850
          %854 = vset.pattern.permute.xlu0 0
          %855 = vperm.xlu0 %854, %v777
          %v856 = vpop.permute.xlu0 %855
          %v858 = vmul.f32 %v746, %v781
          %v859 = vmul.f32 %v747, %v786
          %v860 = vmul.f32 %v748, %v791
          %v861 = vmul.f32 %v749, %v796
          %v862 = vmul.f32 %v750, %v801
          %v863 = vmul.f32 %v751, %v806
          %v864 = vmul.f32 %v752, %v811
          %v865 = vmul.f32 %v753, %v816
          %v866 = vmul.f32 %v754, %v821
          %v867 = vmul.f32 %v755, %v826
          %v868 = vmul.f32 %v756, %v831
          %v869 = vmul.f32 %v757, %v836
          %v870 = vmul.f32 %v758, %v841
          %v871 = vmul.f32 %v759, %v846
          %v872 = vmul.f32 %v760, %v851
          %v873 = vmul.f32 %v761, %v856
          %v874 = vld [vmem:[%s438] sm:$0xf]
          %v875 = vld [vmem:[%s438 + $0x4] sm:$0xf]
          %v876 = vld [vmem:[%s438 + $0x8] sm:$0xf]
          %v877 = vld [vmem:[%s438 + $0xc] sm:$0xf]
          %v878 = vld [vmem:[%s438 + $0x10] sm:$0xf]
          %v879 = vld [vmem:[%s438 + $0x14] sm:$0xf]
          %v880 = vld [vmem:[%s438 + $0x18] sm:$0xf]
          %v881 = vld [vmem:[%s438 + $0x1c] sm:$0xf]
          %v882 = vld [vmem:[%s438 + $0x20] sm:$0xf]
          %v883 = vld [vmem:[%s438 + $0x24] sm:$0xf]
          %v884 = vld [vmem:[%s438 + $0x28] sm:$0xf]
          %v885 = vld [vmem:[%s438 + $0x2c] sm:$0xf]
          %v886 = vld [vmem:[%s438 + $0x30] sm:$0xf]
          %v887 = vld [vmem:[%s438 + $0x34] sm:$0xf]
          %v888 = vld [vmem:[%s438 + $0x38] sm:$0xf]
          %v889 = vld [vmem:[%s438 + $0x3c] sm:$0xf]
          %v890 = vunpack.c.l.bf16 %v874
          %v891 = vunpack.c.l.bf16 %v875
          %v892 = vunpack.c.l.bf16 %v876
          %v893 = vunpack.c.l.bf16 %v877
          %v894 = vunpack.c.l.bf16 %v878
          %v895 = vunpack.c.l.bf16 %v879
          %v896 = vunpack.c.l.bf16 %v880
          %v897 = vunpack.c.l.bf16 %v881
          %v898 = vunpack.c.l.bf16 %v882
          %v899 = vunpack.c.l.bf16 %v883
          %v900 = vunpack.c.l.bf16 %v884
          %v901 = vunpack.c.l.bf16 %v885
          %v902 = vunpack.c.l.bf16 %v886
          %v903 = vunpack.c.l.bf16 %v887
          %v904 = vunpack.c.l.bf16 %v888
          %v905 = vunpack.c.l.bf16 %v889
          %v906 = vld [vmem:[%s4] sm:$0xff]
          %v907 = vld [vmem:[%s4 + $0x8] sm:$0xff]
          %v908 = vld [vmem:[%s4 + $0x10] sm:$0xff]
          %v909 = vld [vmem:[%s4 + $0x18] sm:$0xff]
          %v910 = vld [vmem:[%s4 + $0x20] sm:$0xff]
          %v911 = vld [vmem:[%s4 + $0x28] sm:$0xff]
          %v912 = vld [vmem:[%s4 + $0x30] sm:$0xff]
          %v913 = vld [vmem:[%s4 + $0x38] sm:$0xff]
          %v914 = vld [vmem:[%s5] sm:$0xff]
          %v915 = vld [vmem:[%s5 + $0x8] sm:$0xff]
          %v916 = vld [vmem:[%s5 + $0x10] sm:$0xff]
          %v917 = vld [vmem:[%s5 + $0x18] sm:$0xff]
          %v918 = vld [vmem:[%s5 + $0x20] sm:$0xff]
          %v919 = vld [vmem:[%s5 + $0x28] sm:$0xff]
          %v920 = vld [vmem:[%s5 + $0x30] sm:$0xff]
          %v921 = vld [vmem:[%s5 + $0x38] sm:$0xff]
          %v923 = vsel %vm725, %v858, 0
          %v926 = vsel %vm725, %v859, 0
          %v929 = vsel %vm725, %v860, 0
          %v932 = vsel %vm725, %v861, 0
          %v935 = vsel %vm725, %v862, 0
          %v938 = vsel %vm725, %v863, 0
          %v941 = vsel %vm725, %v864, 0
          %v944 = vsel %vm725, %v865, 0
          %v947 = vsel %vm725, %v866, 0
          %v950 = vsel %vm725, %v867, 0
          %v953 = vsel %vm725, %v868, 0
          %v956 = vsel %vm725, %v869, 0
          %v959 = vsel %vm725, %v870, 0
          %v962 = vsel %vm725, %v871, 0
          %v965 = vsel %vm725, %v872, 0
          %v968 = vsel %vm725, %v873, 0
          %970 = vmatprep.subr.mxu0 0.0
          %971 = vmatpush1.msra.mxu0 %v914
          %972 = vmatprep.subr.mxu0 0.0
          %973 = vmatpush1.msra.mxu0 %v915
          %974 = vmatprep.subr.mxu0 0.0
          %975 = vmatpush1.msra.mxu0 %v916
          %976 = vmatprep.subr.mxu0 0.0
          %977 = vmatpush1.msra.mxu0 %v917
          %978 = vmatprep.subr.mxu0 0.0
          %979 = vmatpush1.msra.mxu0 %v918
          %980 = vmatprep.subr.mxu0 0.0
          %981 = vmatpush1.msra.mxu0 %v919
          %982 = vmatprep.subr.mxu0 0.0
          %983 = vmatpush1.msra.mxu0 %v920
          %984 = vmatprep.subr.mxu0 0.0
          %985 = vmatpush1.msra.mxu0 %v921
          %986 = vmatprep.subr.mxu0 0.0
          %987 = vmatpush1.msra.mxu0 0.0
          %988 = vmatprep.subr.mxu0 0.0
          %989 = vmatpush1.msra.mxu0 0.0
          %990 = vmatprep.subr.mxu0 0.0
          %991 = vmatpush1.msra.mxu0 0.0
          %992 = vmatprep.subr.mxu0 0.0
          %993 = vmatpush1.msra.mxu0 0.0
          %994 = vmatprep.subr.mxu0 0.0
          %995 = vmatpush1.msra.mxu0 0.0
          %996 = vmatprep.subr.mxu0 0.0
          %997 = vmatpush1.msra.mxu0 0.0
          %998 = vmatprep.subr.mxu0 0.0
          %999 = vmatpush1.msra.mxu0 0.0
          %1000 = vmatprep.subr.mxu0 0.0
          %1001 = vmatpush1.msra.mxu0 0.0
          %1002 = vmatprep.subr.mxu0 0.0
          %1003 = vmatpush1.msra.mxu0 0.0
          %1004 = vmatprep.subr.mxu0 0.0
          %1005 = vmatpush1.msra.mxu0 0.0
          %1006 = vmatprep.subr.mxu0 0.0
          %1007 = vmatpush1.msra.mxu0 0.0
          %1008 = vmatprep.subr.mxu0 0.0
          %1009 = vmatpush1.msra.mxu0 0.0
          %1010 = vmatprep.subr.mxu0 0.0
          %1011 = vmatpush1.msra.mxu0 0.0
          %1012 = vmatprep.subr.mxu0 0.0
          %1013 = vmatpush1.msra.mxu0 0.0
          %1014 = vmatprep.subr.mxu0 0.0
          %1015 = vmatpush1.msra.mxu0 0.0
          %1016 = vmatprep.subr.mxu0 0.0
          %1017 = vmatpush1.msra.mxu0 0.0
          %1018 = vmatprep.subr.mxu0 0.0
          %1019 = vmatpush1.msra.mxu0 0.0
          %1020 = vmatprep.subr.mxu0 0.0
          %1021 = vmatpush1.msra.mxu0 0.0
          %1022 = vmatprep.subr.mxu0 0.0
          %1023 = vmatpush1.msra.mxu0 0.0
          %1024 = vmatprep.subr.mxu0 0.0
          %1025 = vmatpush1.msra.mxu0 0.0
          %1026 = vmatprep.subr.mxu0 0.0
          %1027 = vmatpush1.msra.mxu0 0.0
          %1028 = vmatprep.subr.mxu0 0.0
          %1029 = vmatpush1.msra.mxu0 0.0
          %1030 = vmatprep.subr.mxu0 0.0
          %1031 = vmatpush1.msra.mxu0 0.0
          %1032 = vmatprep.subr.mxu0 0.0
          %1033 = vmatpush1.msra.mxu0 0.0
          %1034 = vmatprep.mubr.f32.mxu0 0.0
          %1035 = vmatmul.mubr.f32.gmra.mrb[0].mxu0 %v923
          %v1036 = vpop.f32.mrb[0].mxu0
          %v1037 = vadd.f32 0.0, %v1036
          %v1038 = vpop.f32.mrb[0].mxu0
          %1039 = vmatprep.mubr.f32.mxu0 0.0
          %1040 = vmatmul.mubr.f32.gmra.mrb[0].mxu0 %v926
          %v1041 = vpop.f32.mrb[0].mxu0
          %v1042 = vadd.f32 0.0, %v1041
          %v1043 = vpop.f32.mrb[0].mxu0
          %1044 = vmatprep.mubr.f32.mxu0 0.0
          %1045 = vmatmul.mubr.f32.gmra.mrb[0].mxu0 %v929
          %v1046 = vpop.f32.mrb[0].mxu0
          %v1047 = vadd.f32 0.0, %v1046
          %v1048 = vpop.f32.mrb[0].mxu0
          %1049 = vmatprep.mubr.f32.mxu0 0.0
          %1050 = vmatmul.mubr.f32.gmra.mrb[0].mxu0 %v932
          %v1051 = vpop.f32.mrb[0].mxu0
          %v1052 = vadd.f32 0.0, %v1051
          %v1053 = vpop.f32.mrb[0].mxu0
          %1054 = vmatprep.mubr.f32.mxu0 0.0
          %1055 = vmatmul.mubr.f32.gmra.mrb[0].mxu0 %v935
          %v1056 = vpop.f32.mrb[0].mxu0
          %v1057 = vadd.f32 0.0, %v1056
          %v1058 = vpop.f32.mrb[0].mxu0
          %1059 = vmatprep.mubr.f32.mxu0 0.0
          %1060 = vmatmul.mubr.f32.gmra.mrb[0].mxu0 %v938
          %v1061 = vpop.f32.mrb[0].mxu0
          %v1062 = vadd.f32 0.0, %v1061
          %v1063 = vpop.f32.mrb[0].mxu0
          %1064 = vmatprep.mubr.f32.mxu0 0.0
          %1065 = vmatmul.mubr.f32.gmra.mrb[0].mxu0 %v941
          %v1066 = vpop.f32.mrb[0].mxu0
          %v1067 = vadd.f32 0.0, %v1066
          %v1068 = vpop.f32.mrb[0].mxu0
          %1069 = vmatprep.mubr.f32.mxu0 0.0
          %1070 = vmatmul.mubr.f32.gmra.mrb[0].mxu0 %v944
          %v1071 = vpop.f32.mrb[0].mxu0
          %v1072 = vadd.f32 0.0, %v1071
          %v1073 = vpop.f32.mrb[0].mxu0
          %1074 = vmatprep.mubr.f32.mxu0 0.0
          %1075 = vmatmul.mubr.f32.gmra.mrb[0].mxu0 %v947
          %v1076 = vpop.f32.mrb[0].mxu0
          %v1077 = vadd.f32 0.0, %v1076
          %v1078 = vpop.f32.mrb[0].mxu0
          %1079 = vmatprep.mubr.f32.mxu0 0.0
          %1080 = vmatmul.mubr.f32.gmra.mrb[0].mxu0 %v950
          %v1081 = vpop.f32.mrb[0].mxu0
          %v1082 = vadd.f32 0.0, %v1081
          %v1083 = vpop.f32.mrb[0].mxu0
          %1084 = vmatprep.mubr.f32.mxu0 0.0
          %1085 = vmatmul.mubr.f32.gmra.mrb[0].mxu0 %v953
          %v1086 = vpop.f32.mrb[0].mxu0
          %v1087 = vadd.f32 0.0, %v1086
          %v1088 = vpop.f32.mrb[0].mxu0
          %1089 = vmatprep.mubr.f32.mxu0 0.0
          %1090 = vmatmul.mubr.f32.gmra.mrb[0].mxu0 %v956
          %v1091 = vpop.f32.mrb[0].mxu0
          %v1092 = vadd.f32 0.0, %v1091
          %v1093 = vpop.f32.mrb[0].mxu0
          %1094 = vmatprep.mubr.f32.mxu0 0.0
          %1095 = vmatmul.mubr.f32.gmra.mrb[0].mxu0 %v959
          %v1096 = vpop.f32.mrb[0].mxu0
          %v1097 = vadd.f32 0.0, %v1096
          %v1098 = vpop.f32.mrb[0].mxu0
          %1099 = vmatprep.mubr.f32.mxu0 0.0
          %1100 = vmatmul.mubr.f32.gmra.mrb[0].mxu0 %v962
          %v1101 = vpop.f32.mrb[0].mxu0
          %v1102 = vadd.f32 0.0, %v1101
          %v1103 = vpop.f32.mrb[0].mxu0
          %1104 = vmatprep.mubr.f32.mxu0 0.0
          %1105 = vmatmul.mubr.f32.gmra.mrb[0].mxu0 %v965
          %v1106 = vpop.f32.mrb[0].mxu0
          %v1107 = vadd.f32 0.0, %v1106
          %v1108 = vpop.f32.mrb[0].mxu0
          %1109 = vmatprep.mubr.f32.mxu0 0.0
          %1110 = vmatmul.mubr.f32.gmra.mrb[0].mxu0 %v968
          %v1111 = vpop.f32.mrb[0].mxu0
          %v1112 = vadd.f32 0.0, %v1111
          %v1113 = vpop.f32.mrb[0].mxu0
          %1114 = vdwg.mxu0
          %v1116 = vsel %vm725, %v890, 0
          %v1119 = vsel %vm725, %v891, 0
          %v1122 = vsel %vm725, %v892, 0
          %v1125 = vsel %vm725, %v893, 0
          %v1128 = vsel %vm725, %v894, 0
          %v1131 = vsel %vm725, %v895, 0
          %v1134 = vsel %vm725, %v896, 0
          %v1137 = vsel %vm725, %v897, 0
          %v1140 = vsel %vm725, %v898, 0
          %v1143 = vsel %vm725, %v899, 0
          %v1146 = vsel %vm725, %v900, 0
          %v1149 = vsel %vm725, %v901, 0
          %v1152 = vsel %vm725, %v902, 0
          %v1155 = vsel %vm725, %v903, 0
          %v1158 = vsel %vm725, %v904, 0
          %v1161 = vsel %vm725, %v905, 0
          %1163 = vmatprep.subr.mxu0 0.0
          %1164 = vmatpush1.msra.mxu0 %v906
          %1165 = vmatprep.subr.mxu0 0.0
          %1166 = vmatpush1.msra.mxu0 %v907
          %1167 = vmatprep.subr.mxu0 0.0
          %1168 = vmatpush1.msra.mxu0 %v908
          %1169 = vmatprep.subr.mxu0 0.0
          %1170 = vmatpush1.msra.mxu0 %v909
          %1171 = vmatprep.subr.mxu0 0.0
          %1172 = vmatpush1.msra.mxu0 %v910
          %1173 = vmatprep.subr.mxu0 0.0
          %1174 = vmatpush1.msra.mxu0 %v911
          %1175 = vmatprep.subr.mxu0 0.0
          %1176 = vmatpush1.msra.mxu0 %v912
          %1177 = vmatprep.subr.mxu0 0.0
          %1178 = vmatpush1.msra.mxu0 %v913
          %1179 = vmatprep.subr.mxu0 0.0
          %1180 = vmatpush1.msra.mxu0 0.0
          %1181 = vmatprep.subr.mxu0 0.0
          %1182 = vmatpush1.msra.mxu0 0.0
          %1183 = vmatprep.subr.mxu0 0.0
          %1184 = vmatpush1.msra.mxu0 0.0
          %1185 = vmatprep.subr.mxu0 0.0
          %1186 = vmatpush1.msra.mxu0 0.0
          %1187 = vmatprep.subr.mxu0 0.0
          %1188 = vmatpush1.msra.mxu0 0.0
          %1189 = vmatprep.subr.mxu0 0.0
          %1190 = vmatpush1.msra.mxu0 0.0
          %1191 = vmatprep.subr.mxu0 0.0
          %1192 = vmatpush1.msra.mxu0 0.0
          %1193 = vmatprep.subr.mxu0 0.0
          %1194 = vmatpush1.msra.mxu0 0.0
          %1195 = vmatprep.subr.mxu0 0.0
          %1196 = vmatpush1.msra.mxu0 0.0
          %1197 = vmatprep.subr.mxu0 0.0
          %1198 = vmatpush1.msra.mxu0 0.0
          %1199 = vmatprep.subr.mxu0 0.0
          %1200 = vmatpush1.msra.mxu0 0.0
          %1201 = vmatprep.subr.mxu0 0.0
          %1202 = vmatpush1.msra.mxu0 0.0
          %1203 = vmatprep.subr.mxu0 0.0
          %1204 = vmatpush1.msra.mxu0 0.0
          %1205 = vmatprep.subr.mxu0 0.0
          %1206 = vmatpush1.msra.mxu0 0.0
          %1207 = vmatprep.subr.mxu0 0.0
          %1208 = vmatpush1.msra.mxu0 0.0
          %1209 = vmatprep.subr.mxu0 0.0
          %1210 = vmatpush1.msra.mxu0 0.0
          %1211 = vmatprep.subr.mxu0 0.0
          %1212 = vmatpush1.msra.mxu0 0.0
          %1213 = vmatprep.subr.mxu0 0.0
          %1214 = vmatpush1.msra.mxu0 0.0
          %1215 = vmatprep.subr.mxu0 0.0
          %1216 = vmatpush1.msra.mxu0 0.0
          %1217 = vmatprep.subr.mxu0 0.0
          %1218 = vmatpush1.msra.mxu0 0.0
          %1219 = vmatprep.subr.mxu0 0.0
          %1220 = vmatpush1.msra.mxu0 0.0
          %1221 = vmatprep.subr.mxu0 0.0
          %1222 = vmatpush1.msra.mxu0 0.0
          %1223 = vmatprep.subr.mxu0 0.0
          %1224 = vmatpush1.msra.mxu0 0.0
          %1225 = vmatprep.subr.mxu0 0.0
          %1226 = vmatpush1.msra.mxu0 0.0
          %1227 = vmatprep.mubr.f32.mxu0 0.0
          %1228 = vmatmul.mubr.f32.gmra.mrb[0].mxu0 %v1116
          %v1229 = vpop.f32.mrb[0].mxu0
          %v1230 = vadd.f32 %v1037, %v1229
          %v1231 = vpop.f32.mrb[0].mxu0
          %1232 = vmatprep.mubr.f32.mxu0 0.0
          %1233 = vmatmul.mubr.f32.gmra.mrb[0].mxu0 %v1119
          %v1234 = vpop.f32.mrb[0].mxu0
          %v1235 = vadd.f32 %v1042, %v1234
          %v1236 = vpop.f32.mrb[0].mxu0
          %1237 = vmatprep.mubr.f32.mxu0 0.0
          %1238 = vmatmul.mubr.f32.gmra.mrb[0].mxu0 %v1122
          %v1239 = vpop.f32.mrb[0].mxu0
          %v1240 = vadd.f32 %v1047, %v1239
          %v1241 = vpop.f32.mrb[0].mxu0
          %1242 = vmatprep.mubr.f32.mxu0 0.0
          %1243 = vmatmul.mubr.f32.gmra.mrb[0].mxu0 %v1125
          %v1244 = vpop.f32.mrb[0].mxu0
          %v1245 = vadd.f32 %v1052, %v1244
          %v1246 = vpop.f32.mrb[0].mxu0
          %1247 = vmatprep.mubr.f32.mxu0 0.0
          %1248 = vmatmul.mubr.f32.gmra.mrb[0].mxu0 %v1128
          %v1249 = vpop.f32.mrb[0].mxu0
          %v1250 = vadd.f32 %v1057, %v1249
          %v1251 = vpop.f32.mrb[0].mxu0
          %1252 = vmatprep.mubr.f32.mxu0 0.0
          %1253 = vmatmul.mubr.f32.gmra.mrb[0].mxu0 %v1131
          %v1254 = vpop.f32.mrb[0].mxu0
          %v1255 = vadd.f32 %v1062, %v1254
          %v1256 = vpop.f32.mrb[0].mxu0
          %1257 = vmatprep.mubr.f32.mxu0 0.0
          %1258 = vmatmul.mubr.f32.gmra.mrb[0].mxu0 %v1134
          %v1259 = vpop.f32.mrb[0].mxu0
          %v1260 = vadd.f32 %v1067, %v1259
          %v1261 = vpop.f32.mrb[0].mxu0
          %1262 = vmatprep.mubr.f32.mxu0 0.0
          %1263 = vmatmul.mubr.f32.gmra.mrb[0].mxu0 %v1137
          %v1264 = vpop.f32.mrb[0].mxu0
          %v1265 = vadd.f32 %v1072, %v1264
          %v1266 = vpop.f32.mrb[0].mxu0
          %1267 = vmatprep.mubr.f32.mxu0 0.0
          %1268 = vmatmul.mubr.f32.gmra.mrb[0].mxu0 %v1140
          %v1269 = vpop.f32.mrb[0].mxu0
          %v1270 = vadd.f32 %v1077, %v1269
          %v1271 = vpop.f32.mrb[0].mxu0
          %1272 = vmatprep.mubr.f32.mxu0 0.0
          %1273 = vmatmul.mubr.f32.gmra.mrb[0].mxu0 %v1143
          %v1274 = vpop.f32.mrb[0].mxu0
          %v1275 = vadd.f32 %v1082, %v1274
          %v1276 = vpop.f32.mrb[0].mxu0
          %1277 = vmatprep.mubr.f32.mxu0 0.0
          %1278 = vmatmul.mubr.f32.gmra.mrb[0].mxu0 %v1146
          %v1279 = vpop.f32.mrb[0].mxu0
          %v1280 = vadd.f32 %v1087, %v1279
          %v1281 = vpop.f32.mrb[0].mxu0
          %1282 = vmatprep.mubr.f32.mxu0 0.0
          %1283 = vmatmul.mubr.f32.gmra.mrb[0].mxu0 %v1149
          %v1284 = vpop.f32.mrb[0].mxu0
          %v1285 = vadd.f32 %v1092, %v1284
          %v1286 = vpop.f32.mrb[0].mxu0
          %1287 = vmatprep.mubr.f32.mxu0 0.0
          %1288 = vmatmul.mubr.f32.gmra.mrb[0].mxu0 %v1152
          %v1289 = vpop.f32.mrb[0].mxu0
          %v1290 = vadd.f32 %v1097, %v1289
          %v1291 = vpop.f32.mrb[0].mxu0
          %1292 = vmatprep.mubr.f32.mxu0 0.0
          %1293 = vmatmul.mubr.f32.gmra.mrb[0].mxu0 %v1155
          %v1294 = vpop.f32.mrb[0].mxu0
          %v1295 = vadd.f32 %v1102, %v1294
          %v1296 = vpop.f32.mrb[0].mxu0
          %1297 = vmatprep.mubr.f32.mxu0 0.0
          %1298 = vmatmul.mubr.f32.gmra.mrb[0].mxu0 %v1158
          %v1299 = vpop.f32.mrb[0].mxu0
          %v1300 = vadd.f32 %v1107, %v1299
          %v1301 = vpop.f32.mrb[0].mxu0
          %1302 = vmatprep.mubr.f32.mxu0 0.0
          %1303 = vmatmul.mubr.f32.gmra.mrb[0].mxu0 %v1161
          %v1304 = vpop.f32.mrb[0].mxu0
          %v1305 = vadd.f32 %v1112, %v1304
          %v1306 = vpop.f32.mrb[0].mxu0
          %1307 = vdwg.mxu0
          %v1308 = vld [vmem:[%s6] sm:$0x1]
          %v1310 = vlaneseq
          %v1311 = vshrl.u32 %v1310, 7
          %v1312 = vsub.s32 0, %v1311
          %v1313 = vrot.slane %v1308, %v1312
          %v1315 = vadd.f32 %v1230, %v1313
          %v1316 = vadd.f32 %v1235, %v1313
          %v1317 = vadd.f32 %v1240, %v1313
          %v1318 = vadd.f32 %v1245, %v1313
          %v1319 = vadd.f32 %v1250, %v1313
          %v1320 = vadd.f32 %v1255, %v1313
          %v1321 = vadd.f32 %v1260, %v1313
          %v1322 = vadd.f32 %v1265, %v1313
          %v1323 = vadd.f32 %v1270, %v1313
          %v1324 = vadd.f32 %v1275, %v1313
          %v1325 = vadd.f32 %v1280, %v1313
          %v1326 = vadd.f32 %v1285, %v1313
          %v1327 = vadd.f32 %v1290, %v1313
          %v1328 = vadd.f32 %v1295, %v1313
          %v1329 = vadd.f32 %v1300, %v1313
          %v1330 = vadd.f32 %v1305, %v1313
          %1331 = vst [vmem:[%s426] sm:$0xff] %v1315
          %1332 = vst [vmem:[%s426 + $0x8] sm:$0xff] %v1316
          %1333 = vst [vmem:[%s426 + $0x10] sm:$0xff] %v1317
          %1334 = vst [vmem:[%s426 + $0x18] sm:$0xff] %v1318
          %1335 = vst [vmem:[%s426 + $0x20] sm:$0xff] %v1319
          %1336 = vst [vmem:[%s426 + $0x28] sm:$0xff] %v1320
          %1337 = vst [vmem:[%s426 + $0x30] sm:$0xff] %v1321
          %1338 = vst [vmem:[%s426 + $0x38] sm:$0xff] %v1322
          %1339 = vst [vmem:[%s426 + $0x40] sm:$0xff] %v1323
          %1340 = vst [vmem:[%s426 + $0x48] sm:$0xff] %v1324
          %1341 = vst [vmem:[%s426 + $0x50] sm:$0xff] %v1325
          %1342 = vst [vmem:[%s426 + $0x58] sm:$0xff] %v1326
          %1343 = vst [vmem:[%s426 + $0x60] sm:$0xff] %v1327
          %1344 = vst [vmem:[%s426 + $0x68] sm:$0xff] %v1328
          %1345 = vst [vmem:[%s426 + $0x70] sm:$0xff] %v1329
          %1346 = vst [vmem:[%s426 + $0x78] sm:$0xff] %v1330
        $region97: #{tpu_custom_call.1} parent=84 // pred_fallthru
          _
        %s1347 = sand.u32 %s205, 1
        %s1348 = scalar_lea.sflag [#allocation5], %s1347
        %s1349 = sand.u32 %s205, 1
        %s1350 = smul.addr %s1349, 128
        %s1351 = scalar_lea.vmem [#allocation4], %s1350
        // Predicated region
        $region98: #{tpu_custom_call.1} parent=84 // pred_check
          %p1352 = pneg %p215
        $region99: #{tpu_custom_call.1} parent=84 // pred_check_branch
          %1354 = sbr.rel (%p1352) target = $region101
        $region100: #{tpu_custom_call.1} parent=84 // pred_region
          %s1355 = smul.u32 16, %s25
          %s1357 = ssub.s32 2048, 2048
          %1358 = vsyncadd %s1348, %s1357
          %s1359 = smul.addr %s1355, 128
          %s1360 = scalar_lea.hbm %s7, %s1359
          %s1361 = sshll.u32 %s1351, 4
          %s1362 = int_to_ptr.vmem [resolvable:$true] %s1361
          %1367 = dma.vmem_to_hbm [thread:$0]  %s1362, 2048, %s1360, %s1348, 128, 128, 8
        $region101: #{tpu_custom_call.1} parent=84 // pred_fallthru
          _
      $region85: #{tpu_custom_call.1} parent=5 // pred_fallthru
        _
      %p1368 = scmp.le.s32.totalorder 2, %s16
      // Predicated region
      $region102: #{tpu_custom_call.1} parent=5 // pred_check
        %p1369 = pneg %p1368
      $region103: #{tpu_custom_call.1} parent=5 // pred_check_branch
        %1371 = sbr.rel (%p1369) target = $region105
      $region104: #{tpu_custom_call.1} parent=5 // pred_region
        %s1372 = ssub.s32 %s16, 2
        // Predicated region
        $region106: #{tpu_custom_call.1} parent=104 // pred_check
          %p1373 = pneg %p221
        $region107: #{tpu_custom_call.1} parent=104 // pred_check_branch
          %1375 = sbr.rel (%p1373) target = $region109
        $region108: #{tpu_custom_call.1} parent=104 // pred_region
          %s1376 = sand.u32 %s206, 1
          %s1377 = scalar_lea.sflag [#allocation5], %s1376
          %s1378 = sand.u32 %s206, 1
          %s1379 = smul.addr %s1378, 128
          %s1380 = scalar_lea.vmem [#allocation4], %s1379
          %1381 = dma.done %s1377, 2048
        $region109: #{tpu_custom_call.1} parent=104 // pred_fallthru
          _
      $region105: #{tpu_custom_call.1} parent=5 // pred_fallthru
        _
    $region6: #{tpu_custom_call.1} parent=1 // loop_footer
      %s20 = sadd.s32 1, %s16
    $region7: #{tpu_custom_call.1} parent=1 // loop_footer_branch
      %15 = sbr.rel target = $region3
    $region8: #{tpu_custom_call.1} parent=1 // loop_exit
      _
    %1382 = vsyncpa [#allocation5], 1
    %s1383 = scalar_lea.sflag [#allocation5], 1
    %1384 = vsyncpa %s1383, 1

</llo_original>
